<compile_context>
chip_gen: v5e
topology: v5e:2x2
jax: 0.10.0
libtpu: 0.0.40
codegen_flags: <defaults>
</compile_context>

<pallas_src>
import functools

import jax
import jax.numpy as jnp
from jax.experimental import pallas as pl
from jax.experimental.pallas import tpu as pltpu


def _round_up(n, m):
    return ((n + m - 1) // m) * m


def mlp_kernel(x_ref, w1_ref, b1_ref, w2_ref, b2_ref, o_ref, *, chunk):
    """One batch tile of relu(relu(x @ W1 + b1) @ w2^T + b2).

    x_ref : (TILE_B, D_in)  VMEM (streamed, double-buffered)
    w1_ref: (D_in, H)       VMEM (resident: constant index_map)
    b1_ref: (1, H)          VMEM (resident)
    w2_ref: (1, H)          VMEM (resident; nn.Linear(H, 1).weight layout)
    b2_ref: (1, 1)          SMEM scalar
    o_ref : (1, TILE_B)     VMEM (lane-dense output row)
    """
    w1 = w1_ref[...]
    b1 = b1_ref[...]
    w2 = w2_ref[...]
    b2 = b2_ref[0, 0]

    tile_b = x_ref.shape[0]
    num_chunks = tile_b // chunk

    # Statically-unrolled chunk loop: bounds the (chunk, H) hidden intermediate
    # to <=256 KiB and keeps every store offset static & 128-lane aligned
    # (unmasked dense stores).  Chunks are independent, so live ranges stay
    # per-chunk; num_chunks is small (<=16).
    for c in range(num_chunks):
        r = c * chunk
        xc = x_ref[pl.ds(r, chunk), :]
        # Layer 1 on the MXU, f32 accumulation; bias + ReLU on the VPU in f32.
        h = jnp.dot(
            xc, w1,
            preferred_element_type=jnp.float32,
            precision=jax.lax.Precision.HIGHEST,
        )
        h = jnp.maximum(h + b1, 0.0)
        # Layer 2 as a (1, chunk) contraction on the otherwise-idle MXU:
        # produces a lane-dense output row instead of a lane-sparse column.
        y = jnp.einsum(
            "oh,bh->ob", w2, h,
            preferred_element_type=jnp.float32,
            precision=jax.lax.Precision.HIGHEST,
        )
        o_ref[:, pl.ds(r, chunk)] = jnp.maximum(y + b2, 0.0).astype(o_ref.dtype)


def neural_network_forward(x, w1, b1, w2, b2, *, tile_b=8192, stream_dtype=None):
    """x: (B, D_in); w1: (D_in, H); b1: (1, H); w2: (1, H); b2: (1, 1).

    stream_dtype: optional cast (e.g. jnp.bfloat16) for the streamed x / w1 on
    v6e/v7x — halves HBM read traffic; accumulation / bias / ReLU stay f32.
    Default (None) keeps f32 end-to-end to match the PyTorch module.
    """
    B, d_in = x.shape
    hidden = w1.shape[1]

    # Tile sizing: multiple of 256 (whole (8,128) tiles + lane-aligned chunks).
    # Large tiles amortize the ~0.35us fixed per-grid-step overhead that
    # dominates this memory-bound kernel; cap so big batches keep >= 4 steps.
    tile_b = _round_up(min(max(tile_b, 256), 16384), 256)
    tile_b = min(tile_b, _round_up(B, 256))           # don't over-pad tiny batches
    if B >= 1024:
        tile_b = min(tile_b, _round_up(pl.cdiv(B, 4), 256))

    # In-kernel chunking keeps the (chunk, H) intermediate small (<=256 KiB).
    if tile_b <= 1024:
        chunk = tile_b
    elif tile_b % 1024 == 0:
        chunk = 1024
    elif tile_b % 512 == 0:
        chunk = 512
    else:
        chunk = 256  # tile_b is always a multiple of 256

    b_pad = _round_up(B, tile_b)
    if b_pad != B:
        x = jnp.pad(x, ((0, b_pad - B), (0, 0)))

    if stream_dtype is not None:
        x = x.astype(stream_dtype)
        w1 = w1.astype(stream_dtype)

    grid = (b_pad // tile_b,)

    out = pl.pallas_call(
        functools.partial(mlp_kernel, chunk=chunk),
        out_shape=jax.ShapeDtypeStruct((1, b_pad), jnp.float32),
        grid=grid,
        in_specs=[
            # Streamed batch tile: double-buffered HBM->VMEM prefetch
            # overlapped with compute.
            pl.BlockSpec((tile_b, d_in), lambda i: (i, 0)),
            # Weights / biases: constant block index -> fetched once, resident.
            pl.BlockSpec((d_in, hidden), lambda i: (0, 0)),
            pl.BlockSpec((1, hidden), lambda i: (0, 0)),
            pl.BlockSpec((1, hidden), lambda i: (0, 0)),
            # Scalar bias lives in SMEM (no vector DMA for one scalar).
            pl.BlockSpec(memory_space=pltpu.MemorySpace.SMEM),
        ],
        # Lane-dense (1, tile_b) output row -> unmasked full-lane stores.
        out_specs=pl.BlockSpec((1, tile_b), lambda i: (0, i)),
        compiler_params=pltpu.CompilerParams(
            dimension_semantics=("parallel",),   # batch tiles shard across TCs
            vmem_limit_bytes=32 * 1024 * 1024,   # headroom above v5e's 16 MiB default
        ),
    )(x, w1, b1, w2, b2)

    # Padded tail rows (relu of biases) are sliced off; the reshape is free.
    return out[0, :B].reshape(B, 1)


if __name__ == "__main__":
    # Small, module-consistent shapes: X_norm.shape[0] -> in_features = 32.
    batch = 1024          # small, but enough to exercise a 4-step parallel grid
    in_features = 32
    hidden = 64

    key = jax.random.PRNGKey(0)
    kx, kw1, kb1, kw2, kb2 = jax.random.split(key, 5)

    # Deterministic PyTorch-style uniform init (bounds 1/sqrt(fan_in)).
    bound1 = 1.0 / jnp.sqrt(in_features)
    bound2 = 1.0 / jnp.sqrt(hidden)
    w1 = jax.random.uniform(kw1, (in_features, hidden), jnp.float32, -bound1, bound1)
    b1 = jax.random.uniform(kb1, (1, hidden), jnp.float32, -bound1, bound1)
    # w2 kept in nn.Linear(64, 1).weight layout: (1, 64).
    w2 = jax.random.uniform(kw2, (1, hidden), jnp.float32, -bound2, bound2)
    b2 = jax.random.uniform(kb2, (1, 1), jnp.float32, -bound2, bound2)

    x = jax.random.normal(kx, (batch, in_features), jnp.float32)

    out = neural_network_forward(x, w1, b1, w2, b2)
    out = jax.block_until_ready(out)

    # Reference check in plain JAX (same f32 math as the PyTorch module).
    ref = jnp.maximum(jnp.maximum(x @ w1 + b1, 0.0) @ w2.T + b2, 0.0)
    assert out.shape == (batch, 1)
    assert jnp.allclose(out, ref, atol=1e-4, rtol=1e-4), float(
        jnp.max(jnp.abs(out - ref))
    )

    print("KERNEL_OK")
</pallas_src>

<mosaic_0001>
module attributes {stable_mosaic.version = 11 : i64} {
  func.func @mlp_kernel(%arg0: i32, %arg1: memref<256x32xf32, #tpu.memory_space<vmem>>, %arg2: memref<32x64xf32, #tpu.memory_space<vmem>>, %arg3: memref<1x64xf32, #tpu.memory_space<vmem>>, %arg4: memref<1x64xf32, #tpu.memory_space<vmem>>, %arg5: memref<1x1xf32, #tpu.memory_space<smem>>, %arg6: memref<1x256xf32, #tpu.memory_space<vmem>>) attributes {dimension_semantics = [#tpu.dimension_semantics<parallel>], iteration_bounds = array<i64: 4>, scalar_prefetch = 0 : i64, scratch_operands = 0 : i64, tpu.core_type = #tpu.core_type<tc>, window_params = [{transform_indices = @transform_0, window_bounds = array<i64: 256, 32>}, {pipeline_mode = #tpu.pipeline_mode<synchronous>, transform_indices = @transform_1, window_bounds = array<i64: 32, 64>}, {pipeline_mode = #tpu.pipeline_mode<synchronous>, transform_indices = @transform_2, window_bounds = array<i64: 1, 64>}, {pipeline_mode = #tpu.pipeline_mode<synchronous>, transform_indices = @transform_3, window_bounds = array<i64: 1, 64>}, {transform_indices = @transform_4, window_bounds = array<i64: 1, 1>}, {transform_indices = @transform_5, window_bounds = array<i64: 1, 256>}]} {
    %c0 = arith.constant 0 : index
    %c0_0 = arith.constant 0 : index
    %0 = vector.load %arg2[%c0, %c0_0] : memref<32x64xf32, #tpu.memory_space<vmem>>, vector<32x64xf32>
    %c0_1 = arith.constant 0 : index
    %c0_2 = arith.constant 0 : index
    %1 = vector.load %arg3[%c0_1, %c0_2] : memref<1x64xf32, #tpu.memory_space<vmem>>, vector<1x64xf32>
    %c0_3 = arith.constant 0 : index
    %c0_4 = arith.constant 0 : index
    %2 = vector.load %arg4[%c0_3, %c0_4] : memref<1x64xf32, #tpu.memory_space<vmem>>, vector<1x64xf32>
    %c0_5 = arith.constant 0 : index
    %c0_6 = arith.constant 0 : index
    %3 = memref.load %arg5[%c0_5, %c0_6] : memref<1x1xf32, #tpu.memory_space<smem>>
    %c0_7 = arith.constant 0 : index
    %c0_8 = arith.constant 0 : index
    %4 = vector.load %arg1[%c0_7, %c0_8] : memref<256x32xf32, #tpu.memory_space<vmem>>, vector<256x32xf32>
    %cst = arith.constant dense<0.000000e+00> : vector<256x64xf32>
    %5 = tpu.matmul %4, %0, %cst {dimension_numbers = #tpu.dot_dimension_numbers<[1], [0], [0], [1], [0, 0, 1, 1], [], []>, precision = #tpu.contract_precision<fp32>} : vector<256x32xf32>, vector<32x64xf32>, vector<256x64xf32> -> vector<256x64xf32>
    %6 = vector.broadcast %1 : vector<1x64xf32> to vector<256x64xf32>
    %7 = arith.addf %5, %6 : vector<256x64xf32>
    %cst_9 = arith.constant 0.000000e+00 : f32
    %8 = vector.broadcast %cst_9 : f32 to vector<256x64xf32>
    %9 = arith.maximumf %7, %8 : vector<256x64xf32>
    "tpu.trace_start"() <{level = 10 : i32, message = "oh,bh->ob"}> : () -> ()
    %cst_10 = arith.constant dense<0.000000e+00> : vector<1x256xf32>
    %10 = tpu.matmul %2, %9, %cst_10 {dimension_numbers = #tpu.dot_dimension_numbers<[1], [1], [0], [0], [0, 0, 1, 0], [], []>, precision = #tpu.contract_precision<fp32>} : vector<1x64xf32>, vector<256x64xf32>, vector<1x256xf32> -> vector<1x256xf32>
    "tpu.trace_stop"() : () -> ()
    %11 = vector.broadcast %3 : f32 to vector<1x256xf32>
    %12 = arith.addf %10, %11 : vector<1x256xf32>
    %cst_11 = arith.constant 0.000000e+00 : f32
    %13 = vector.broadcast %cst_11 : f32 to vector<1x256xf32>
    %14 = arith.maximumf %12, %13 : vector<1x256xf32>
    %c0_12 = arith.constant 0 : index
    %c0_13 = arith.constant 0 : index
    %15 = vector.load %arg6[%c0_12, %c0_13] : memref<1x256xf32, #tpu.memory_space<vmem>>, vector<1x256xf32>
    tpu.vector_store %arg6[%c0_12, %c0_13], %14 {strides = array<i32>} : memref<1x256xf32, #tpu.memory_space<vmem>>, vector<1x256xf32>,
    return
  }
  func.func @transform_0(%arg0: i32) -> (i32, i32) {
    %c0_i32 = arith.constant 0 : i32
    %c0_i32_0 = arith.constant 0 : i32
    return %arg0, %c0_i32 : i32, i32
  }
  func.func @transform_1(%arg0: i32) -> (i32, i32) {
    %c0_i32 = arith.constant 0 : i32
    %c0_i32_0 = arith.constant 0 : i32
    %c0_i32_1 = arith.constant 0 : i32
    return %c0_i32, %c0_i32_0 : i32, i32
  }
  func.func @transform_2(%arg0: i32) -> (i32, i32) {
    %c0_i32 = arith.constant 0 : i32
    %c0_i32_0 = arith.constant 0 : i32
    %c0_i32_1 = arith.constant 0 : i32
    return %c0_i32, %c0_i32_0 : i32, i32
  }
  func.func @transform_3(%arg0: i32) -> (i32, i32) {
    %c0_i32 = arith.constant 0 : i32
    %c0_i32_0 = arith.constant 0 : i32
    %c0_i32_1 = arith.constant 0 : i32
    return %c0_i32, %c0_i32_0 : i32, i32
  }
  func.func @transform_4(%arg0: i32) -> (i32, i32) {
    %c0_i32 = arith.constant 0 : i32
    %c0_i32_0 = arith.constant 0 : i32
    %c0_i32_1 = arith.constant 0 : i32
    return %c0_i32, %c0_i32_0 : i32, i32
  }
  func.func @transform_5(%arg0: i32) -> (i32, i32) {
    %c0_i32 = arith.constant 0 : i32
    %c0_i32_0 = arith.constant 0 : i32
    return %c0_i32, %arg0 : i32, i32
  }
}

</mosaic_0001>

<llo_original>
// kernel: tpu_custom_call.1
$region0: #{tpu_custom_call.1}
  #allocation0 [shape = 'u32[]', space=smem, size = 0x4, offset = 0x4, fixed_abs, tag = 'smem constant byte address 0x4 - core index']
  #allocation1 [shape = 'u32[72,128]{1,0:T(1,128)}', space=vmem, size = 0x9000, scoped, tag = 'internal scratch']
  #allocation2 [shape = 'f32[1,1]{1,0:T(1,128)S(6)}', space=smem, size = 0x200, scoped, tag = 'scoped memory for tpu_custom_call.1']
  %s0 = inlined_call_operand.vmem [shape: f32[1024,32], index: 0, kind: input, shape index: {}]
  %s1 = inlined_call_operand.vmem [shape: f32[32,64], index: 1, kind: input, shape index: {}]
  %s2 = inlined_call_operand.vmem [shape: f32[1,64], index: 2, kind: input, shape index: {}]
  %s3 = inlined_call_operand.vmem [shape: f32[1,64], index: 3, kind: input, shape index: {}]
  %s4 = inlined_call_operand.<no memory space> [shape: f32[1,1], index: 4, kind: input, shape index: {}]
  %s5 = inlined_call_operand.hbm [shape: f32[1,1024], index: 5, kind: output, shape index: {}]
  %s6 = sld [smem:[#allocation0]]
  $region53: #{tpu_custom_call.1} parent=0
    _
  %s8 = ssub.s32 1, %s6
  %s9 = scalar_select 0, %s8, %s6
  %10 = sst [smem:[#allocation2]] %s4
  $region1: #{tpu_custom_call.1} parent=0
    #allocation3 [shape = 'u8[2048]{0}', space=vmem, size = 0x800, scoped, tag = 'output window, operand 0']
    #allocation4 [shape = 's32[2]{0}', space=sflag, size = 0x8, scoped, tag = 'scoped memory for tpu_custom_call.1']
    %11 = vsyncpa [#allocation4], 0
    %s12 = scalar_lea.sflag [#allocation4], 1
    %13 = vsyncpa %s12, 0
    loop: start=0, step=1, limit=6
    $region2: #{tpu_custom_call.1} parent=1 // loop_pre_header
      _
    $region3: #{tpu_custom_call.1} parent=1 // loop_header
      %s15 = sphi 0, %s19
      %p16 = scmp.ge.s32.totalorder %s15, 6
      %s25 = sphi 0, %s27
      %s28 = sphi 0, %s25
      %s29 = sphi 0, %s28
      %s45 = sphi 0, %s29
      %s49 = sphi 0, %s49
      %s51 = sphi 0, %s49
      %s52 = sphi 0, %s51
      %s66 = sphi 0, %s52
      %s70 = sphi 0, %s70
      %s72 = sphi 0, %s70
      %s73 = sphi 0, %s72
      %s87 = sphi 0, %s73
      %s91 = sphi 0, %s91
      %s93 = sphi 0, %s91
      %s94 = sphi 0, %s93
      %s108 = sphi 0, %s94
      %s112 = sphi 0, %s112
      %s114 = sphi 0, %s112
      %s115 = sphi 0, %s114
      %s129 = sphi 0, %s115
      %s135 = sphi 0, %s137
      %s138 = sphi 0, %s135
      %s139 = sphi 0, %s138
      %s155 = sphi 0, %s139
    $region4: #{tpu_custom_call.1} parent=1 // loop_header_branch
      %18 = sbr.rel (%p16) target = $region8
    $region5: #{tpu_custom_call.1} parent=1 // loop_body
      %s20 = ssub.s32 %s15, 1
      %s21 = ssub.s32 %s15, 2
      %s22 = sadd.s32 %s15, 1
      %s23 = ssub.s32 %s15, %s22
      %p24 = scmp.eq.s32.totalorder %s23, 0
      %s26 = sadd.s32 %s25, 1
      %s27 = scalar_select %p24, %s25, %s26
      %p30 = pneg %p24
      %p31 = scmp.eq.s32.totalorder %s15, 3
      %p32 = por %p30, %p31
      %p33 = scmp.ne.s32.totalorder %s25, %s28
      %p34 = scmp.eq.s32.totalorder %s15, 0
      %p35 = por %p33, %p34
      %p36 = scmp.ne.s32.totalorder %s25, %s28
      %p37 = scmp.eq.s32.totalorder %s20, 3
      %p38 = por %p36, %p37
      %p39 = scmp.ne.s32.totalorder %s28, %s29
      %p40 = scmp.eq.s32.totalorder %s20, 0
      %p41 = por %p39, %p40
      %p42 = scmp.ne.s32.totalorder %s28, %s29
      %p43 = scmp.eq.s32.totalorder %s21, 3
      %p44 = por %p42, %p43
      %p46 = scmp.ne.s32.totalorder %s29, %s45
      %p47 = scmp.eq.s32.totalorder %s21, 0
      %p48 = por %p46, %p47
      %s50 = sadd.s32 %s49, 1
      %p53 = scmp.eq.s32.totalorder %s15, 3
      %p54 = scmp.ne.s32.totalorder %s49, %s51
      %p55 = scmp.eq.s32.totalorder %s15, 0
      %p56 = por %p54, %p55
      %p57 = scmp.ne.s32.totalorder %s49, %s51
      %p58 = scmp.eq.s32.totalorder %s20, 3
      %p59 = por %p57, %p58
      %p60 = scmp.ne.s32.totalorder %s51, %s52
      %p61 = scmp.eq.s32.totalorder %s20, 0
      %p62 = por %p60, %p61
      %p63 = scmp.ne.s32.totalorder %s51, %s52
      %p64 = scmp.eq.s32.totalorder %s21, 3
      %p65 = por %p63, %p64
      %p67 = scmp.ne.s32.totalorder %s52, %s66
      %p68 = scmp.eq.s32.totalorder %s21, 0
      %p69 = por %p67, %p68
      %s71 = sadd.s32 %s70, 1
      %p74 = scmp.eq.s32.totalorder %s15, 3
      %p75 = scmp.ne.s32.totalorder %s70, %s72
      %p76 = scmp.eq.s32.totalorder %s15, 0
      %p77 = por %p75, %p76
      %p78 = scmp.ne.s32.totalorder %s70, %s72
      %p79 = scmp.eq.s32.totalorder %s20, 3
      %p80 = por %p78, %p79
      %p81 = scmp.ne.s32.totalorder %s72, %s73
      %p82 = scmp.eq.s32.totalorder %s20, 0
      %p83 = por %p81, %p82
      %p84 = scmp.ne.s32.totalorder %s72, %s73
      %p85 = scmp.eq.s32.totalorder %s21, 3
      %p86 = por %p84, %p85
      %p88 = scmp.ne.s32.totalorder %s73, %s87
      %p89 = scmp.eq.s32.totalorder %s21, 0
      %p90 = por %p88, %p89
      %s92 = sadd.s32 %s91, 1
      %p95 = scmp.eq.s32.totalorder %s15, 3
      %p96 = scmp.ne.s32.totalorder %s91, %s93
      %p97 = scmp.eq.s32.totalorder %s15, 0
      %p98 = por %p96, %p97
      %p99 = scmp.ne.s32.totalorder %s91, %s93
      %p100 = scmp.eq.s32.totalorder %s20, 3
      %p101 = por %p99, %p100
      %p102 = scmp.ne.s32.totalorder %s93, %s94
      %p103 = scmp.eq.s32.totalorder %s20, 0
      %p104 = por %p102, %p103
      %p105 = scmp.ne.s32.totalorder %s93, %s94
      %p106 = scmp.eq.s32.totalorder %s21, 3
      %p107 = por %p105, %p106
      %p109 = scmp.ne.s32.totalorder %s94, %s108
      %p110 = scmp.eq.s32.totalorder %s21, 0
      %p111 = por %p109, %p110
      %s113 = sadd.s32 %s112, 1
      %p116 = scmp.eq.s32.totalorder %s15, 3
      %p117 = scmp.ne.s32.totalorder %s112, %s114
      %p118 = scmp.eq.s32.totalorder %s15, 0
      %p119 = por %p117, %p118
      %p120 = scmp.ne.s32.totalorder %s112, %s114
      %p121 = scmp.eq.s32.totalorder %s20, 3
      %p122 = por %p120, %p121
      %p123 = scmp.ne.s32.totalorder %s114, %s115
      %p124 = scmp.eq.s32.totalorder %s20, 0
      %p125 = por %p123, %p124
      %p126 = scmp.ne.s32.totalorder %s114, %s115
      %p127 = scmp.eq.s32.totalorder %s21, 3
      %p128 = por %p126, %p127
      %p130 = scmp.ne.s32.totalorder %s115, %s129
      %p131 = scmp.eq.s32.totalorder %s21, 0
      %p132 = por %p130, %p131
      %s133 = ssub.s32 %s15, %s22
      %p134 = scmp.eq.s32.totalorder %s133, 0
      %s136 = sadd.s32 %s135, 1
      %s137 = scalar_select %p134, %s135, %s136
      %p140 = pneg %p134
      %p141 = scmp.eq.s32.totalorder %s15, 3
      %p142 = por %p140, %p141
      %p143 = scmp.ne.s32.totalorder %s135, %s138
      %p144 = scmp.eq.s32.totalorder %s15, 0
      %p145 = por %p143, %p144
      %p146 = scmp.ne.s32.totalorder %s135, %s138
      %p147 = scmp.eq.s32.totalorder %s20, 3
      %p148 = por %p146, %p147
      %p149 = scmp.ne.s32.totalorder %s138, %s139
      %p150 = scmp.eq.s32.totalorder %s20, 0
      %p151 = por %p149, %p150
      %p152 = scmp.ne.s32.totalorder %s138, %s139
      %p153 = scmp.eq.s32.totalorder %s21, 3
      %p154 = por %p152, %p153
      %p156 = scmp.ne.s32.totalorder %s139, %s155
      %p157 = scmp.eq.s32.totalorder %s21, 0
      %p158 = por %p156, %p157
      %p159 = scmp.le.s32.totalorder 1, %s15
      %p160 = scmp.lt.s32.totalorder %s15, 5
      %p161 = pnand %p159, %p160
      %p162 = pneg %p161
      // Predicated region
      $region9: #{tpu_custom_call.1} parent=5 // pred_check
        _
      $region10: #{tpu_custom_call.1} parent=5 // pred_check_branch
        %164 = sbr.rel (%p161) target = $region12
      $region11: #{tpu_custom_call.1} parent=5 // pred_region
        %s165 = ssub.s32 %s15, 1
        // Predicated region
        $region13: #{tpu_custom_call.1} parent=11 // pred_check
          %p166 = pneg %p62
        $region14: #{tpu_custom_call.1} parent=11 // pred_check_branch
          %168 = sbr.rel (%p166) target = $region16
        $region15: #{tpu_custom_call.1} parent=11 // pred_region
          _
        $region16: #{tpu_custom_call.1} parent=11 // pred_fallthru
          _
        // Predicated region
        $region17: #{tpu_custom_call.1} parent=11 // pred_check
          %p169 = pneg %p83
        $region18: #{tpu_custom_call.1} parent=11 // pred_check_branch
          %171 = sbr.rel (%p169) target = $region20
        $region19: #{tpu_custom_call.1} parent=11 // pred_region
          _
        $region20: #{tpu_custom_call.1} parent=11 // pred_fallthru
          _
        // Predicated region
        $region21: #{tpu_custom_call.1} parent=11 // pred_check
          %p172 = pneg %p104
        $region22: #{tpu_custom_call.1} parent=11 // pred_check_branch
          %174 = sbr.rel (%p172) target = $region24
        $region23: #{tpu_custom_call.1} parent=11 // pred_region
          _
        $region24: #{tpu_custom_call.1} parent=11 // pred_fallthru
          _
        // Predicated region
        $region25: #{tpu_custom_call.1} parent=11 // pred_check
          %p175 = pneg %p125
        $region26: #{tpu_custom_call.1} parent=11 // pred_check_branch
          %177 = sbr.rel (%p175) target = $region28
        $region27: #{tpu_custom_call.1} parent=11 // pred_region
          _
        $region28: #{tpu_custom_call.1} parent=11 // pred_fallthru
          _
      $region12: #{tpu_custom_call.1} parent=5 // pred_fallthru
        _
      %p178 = scmp.lt.s32.totalorder %s15, 4
      // Predicated region
      $region29: #{tpu_custom_call.1} parent=5 // pred_check
        %p179 = pneg %p178
      $region30: #{tpu_custom_call.1} parent=5 // pred_check_branch
        %181 = sbr.rel (%p179) target = $region32
      $region31: #{tpu_custom_call.1} parent=5 // pred_region
        // Predicated region
        $region33: #{tpu_custom_call.1} parent=31 // pred_check
          %p182 = pneg %p35
        $region34: #{tpu_custom_call.1} parent=31 // pred_check_branch
          %184 = sbr.rel (%p182) target = $region36
        $region35: #{tpu_custom_call.1} parent=31 // pred_region
          %s185 = smul.u32 32, %s15
          %p186 = scmp.lt.s32.totalorder %s185, 127
          %s187 = scalar_select %p186, %s185, 127
          %s188 = smul.addr %s187, 8
          %s189 = scalar_lea.vmem %s0, %s188
          %s190 = smul.u32 32, %s15
        $region36: #{tpu_custom_call.1} parent=31 // pred_fallthru
          _
      $region32: #{tpu_custom_call.1} parent=5 // pred_fallthru
        _
      %p191 = scmp.le.s32.totalorder 1, %s15
      %p192 = scmp.lt.s32.totalorder %s15, 5
      %p193 = pnand %p191, %p192
      %p194 = pneg %p193
      // Predicated region
      $region37: #{tpu_custom_call.1} parent=5 // pred_check
        _
      $region38: #{tpu_custom_call.1} parent=5 // pred_check_branch
        %196 = sbr.rel (%p193) target = $region40
      $region39: #{tpu_custom_call.1} parent=5 // pred_region
        %s197 = ssub.s32 %s15, 1
        %s198 = smul.u32 32, %s20
        %p199 = scmp.lt.s32.totalorder %s198, 127
        %s200 = scalar_select %p199, %s198, 127
        %s201 = smul.addr %s200, 8
        %s202 = scalar_lea.vmem %s0, %s201
        %p203 = pneg %p41
        %p204 = pneg %p38
        %p205 = pneg %p62
        %p206 = pneg %p59
        %p207 = pneg %p83
        %p208 = pneg %p80
        %p209 = pneg %p104
        %p210 = pneg %p101
        %p211 = pneg %p125
        %p212 = pneg %p122
        %p213 = pneg %p151
        %p214 = pneg %p148
        %s215 = sand.u32 %s138, 1
        %s216 = scalar_lea.sflag [#allocation4], %s215
        %s217 = sand.u32 %s138, 1
        %s218 = smul.addr %s217, 2
        %s219 = scalar_lea.vmem [#allocation3], %s218
        %s220 = smul.u32 32, %s20
        %p221 = scmp.lt.s32.totalorder %s220, 127
        %s222 = scalar_select %p221, %s220, 127
        %s223 = smul.addr %s222, 8
        %s224 = scalar_lea.vmem %s0, %s223
        %s225 = smul.u32 32, %s20
        %s226 = smul.u32 2, %s20
        %v227 = vld [vmem:[%s1] sm:$0xff]
        %v228 = vld [vmem:[%s1 + $0x8] sm:$0xff]
        %v229 = vld [vmem:[%s1 + $0x10] sm:$0xff]
        %v230 = vld [vmem:[%s1 + $0x18] sm:$0xff]
        %v231 = vld [vmem:[%s2] sm:$0x1]
        %v232 = vld [vmem:[%s3] sm:$0x1]
        %s233 = sld [smem:[#allocation2]]
        %v234 = vld [vmem:[%s224] sm:$0xff]
        %v235 = vld [vmem:[%s224 + $0x8] sm:$0xff]
        %v236 = vld [vmem:[%s224 + $0x10] sm:$0xff]
        %v237 = vld [vmem:[%s224 + $0x18] sm:$0xff]
        %v238 = vld [vmem:[%s224 + $0x20] sm:$0xff]
        %v239 = vld [vmem:[%s224 + $0x28] sm:$0xff]
        %v240 = vld [vmem:[%s224 + $0x30] sm:$0xff]
        %v241 = vld [vmem:[%s224 + $0x38] sm:$0xff]
        %v242 = vld [vmem:[%s224 + $0x40] sm:$0xff]
        %v243 = vld [vmem:[%s224 + $0x48] sm:$0xff]
        %v244 = vld [vmem:[%s224 + $0x50] sm:$0xff]
        %v245 = vld [vmem:[%s224 + $0x58] sm:$0xff]
        %v246 = vld [vmem:[%s224 + $0x60] sm:$0xff]
        %v247 = vld [vmem:[%s224 + $0x68] sm:$0xff]
        %v248 = vld [vmem:[%s224 + $0x70] sm:$0xff]
        %v249 = vld [vmem:[%s224 + $0x78] sm:$0xff]
        %v250 = vld [vmem:[%s224 + $0x80] sm:$0xff]
        %v251 = vld [vmem:[%s224 + $0x88] sm:$0xff]
        %v252 = vld [vmem:[%s224 + $0x90] sm:$0xff]
        %v253 = vld [vmem:[%s224 + $0x98] sm:$0xff]
        %v254 = vld [vmem:[%s224 + $0xa0] sm:$0xff]
        %v255 = vld [vmem:[%s224 + $0xa8] sm:$0xff]
        %v256 = vld [vmem:[%s224 + $0xb0] sm:$0xff]
        %v257 = vld [vmem:[%s224 + $0xb8] sm:$0xff]
        %v258 = vld [vmem:[%s224 + $0xc0] sm:$0xff]
        %v259 = vld [vmem:[%s224 + $0xc8] sm:$0xff]
        %v260 = vld [vmem:[%s224 + $0xd0] sm:$0xff]
        %v261 = vld [vmem:[%s224 + $0xd8] sm:$0xff]
        %v262 = vld [vmem:[%s224 + $0xe0] sm:$0xff]
        %v263 = vld [vmem:[%s224 + $0xe8] sm:$0xff]
        %v264 = vld [vmem:[%s224 + $0xf0] sm:$0xff]
        %v265 = vld [vmem:[%s224 + $0xf8] sm:$0xff]
        %v267 = vperm.slane %v231, 0
        %vm269 = vcmask 261120
        %v271 = vsel %vm269, %v234, 0
        %v274 = vsel %vm269, %v235, 0
        %v277 = vsel %vm269, %v236, 0
        %v280 = vsel %vm269, %v237, 0
        %v283 = vsel %vm269, %v238, 0
        %v286 = vsel %vm269, %v239, 0
        %v289 = vsel %vm269, %v240, 0
        %v292 = vsel %vm269, %v241, 0
        %v295 = vsel %vm269, %v242, 0
        %v298 = vsel %vm269, %v243, 0
        %v301 = vsel %vm269, %v244, 0
        %v304 = vsel %vm269, %v245, 0
        %v307 = vsel %vm269, %v246, 0
        %v310 = vsel %vm269, %v247, 0
        %v313 = vsel %vm269, %v248, 0
        %v316 = vsel %vm269, %v249, 0
        %v319 = vsel %vm269, %v250, 0
        %v322 = vsel %vm269, %v251, 0
        %v325 = vsel %vm269, %v252, 0
        %v328 = vsel %vm269, %v253, 0
        %v331 = vsel %vm269, %v254, 0
        %v334 = vsel %vm269, %v255, 0
        %v337 = vsel %vm269, %v256, 0
        %v340 = vsel %vm269, %v257, 0
        %v343 = vsel %vm269, %v258, 0
        %v346 = vsel %vm269, %v259, 0
        %v349 = vsel %vm269, %v260, 0
        %v352 = vsel %vm269, %v261, 0
        %v355 = vsel %vm269, %v262, 0
        %v358 = vsel %vm269, %v263, 0
        %v361 = vsel %vm269, %v264, 0
        %v364 = vsel %vm269, %v265, 0
        %366 = vmatpush.msra.mxu0 0.0
        %367 = vmatpush.msra.mxu0 0.0
        %368 = vmatpush.msra.mxu0 0.0
        %369 = vmatpush.msra.mxu0 0.0
        %370 = vmatpush.msra.mxu0 0.0
        %371 = vmatpush.msra.mxu0 0.0
        %372 = vmatpush.msra.mxu0 0.0
        %373 = vmatpush.msra.mxu0 0.0
        %374 = vmatpush.msra.mxu0 0.0
        %375 = vmatpush.msra.mxu0 0.0
        %376 = vmatpush.msra.mxu0 0.0
        %377 = vmatpush.msra.mxu0 0.0
        %v378 = vand.u32 %v230, 4294901760
        %379 = vmatpush.msra.mxu0 %v378
        %v380 = vand.u32 %v229, 4294901760
        %381 = vmatpush.msra.mxu0 %v380
        %v382 = vand.u32 %v228, 4294901760
        %383 = vmatpush.msra.mxu0 %v382
        %v384 = vand.u32 %v227, 4294901760
        %385 = vmatpush.msra.mxu0 %v384
        %v386 = vand.u32 %v271, 4294901760
        %v387 = vsub.f32 %v271, %v386
        %v388 = vand.u32 %v387, 4294901760
        %v389 = vsub.f32 %v387, %v388
        %v390 = vand.u32 %v389, 4294901760
        %391 = vmatmul.f32.gmra.mxu0 %v390
        %v392 = vpop.f32.mrf.mxu0
        %v393 = vadd.f32 %v267, %v392
        %v394 = vand.u32 %v274, 4294901760
        %v395 = vsub.f32 %v274, %v394
        %v396 = vand.u32 %v395, 4294901760
        %v397 = vsub.f32 %v395, %v396
        %v398 = vand.u32 %v397, 4294901760
        %399 = vmatmul.f32.gmra.mxu0 %v398
        %v400 = vpop.f32.mrf.mxu0
        %v401 = vadd.f32 %v267, %v400
        %v402 = vand.u32 %v277, 4294901760
        %v403 = vsub.f32 %v277, %v402
        %v404 = vand.u32 %v403, 4294901760
        %v405 = vsub.f32 %v403, %v404
        %v406 = vand.u32 %v405, 4294901760
        %407 = vmatmul.f32.gmra.mxu0 %v406
        %v408 = vpop.f32.mrf.mxu0
        %v409 = vadd.f32 %v267, %v408
        %v410 = vand.u32 %v280, 4294901760
        %v411 = vsub.f32 %v280, %v410
        %v412 = vand.u32 %v411, 4294901760
        %v413 = vsub.f32 %v411, %v412
        %v414 = vand.u32 %v413, 4294901760
        %415 = vmatmul.f32.gmra.mxu0 %v414
        %v416 = vpop.f32.mrf.mxu0
        %v417 = vadd.f32 %v267, %v416
        %v418 = vand.u32 %v283, 4294901760
        %v419 = vsub.f32 %v283, %v418
        %v420 = vand.u32 %v419, 4294901760
        %v421 = vsub.f32 %v419, %v420
        %v422 = vand.u32 %v421, 4294901760
        %423 = vmatmul.f32.gmra.mxu0 %v422
        %v424 = vpop.f32.mrf.mxu0
        %v425 = vadd.f32 %v267, %v424
        %v426 = vand.u32 %v286, 4294901760
        %v427 = vsub.f32 %v286, %v426
        %v428 = vand.u32 %v427, 4294901760
        %v429 = vsub.f32 %v427, %v428
        %v430 = vand.u32 %v429, 4294901760
        %431 = vmatmul.f32.gmra.mxu0 %v430
        %v432 = vpop.f32.mrf.mxu0
        %v433 = vadd.f32 %v267, %v432
        %v434 = vand.u32 %v289, 4294901760
        %v435 = vsub.f32 %v289, %v434
        %v436 = vand.u32 %v435, 4294901760
        %v437 = vsub.f32 %v435, %v436
        %v438 = vand.u32 %v437, 4294901760
        %439 = vmatmul.f32.gmra.mxu0 %v438
        %v440 = vpop.f32.mrf.mxu0
        %v441 = vadd.f32 %v267, %v440
        %v442 = vand.u32 %v292, 4294901760
        %v443 = vsub.f32 %v292, %v442
        %v444 = vand.u32 %v443, 4294901760
        %v445 = vsub.f32 %v443, %v444
        %v446 = vand.u32 %v445, 4294901760
        %447 = vmatmul.f32.gmra.mxu0 %v446
        %v448 = vpop.f32.mrf.mxu0
        %v449 = vadd.f32 %v267, %v448
        %v450 = vand.u32 %v295, 4294901760
        %v451 = vsub.f32 %v295, %v450
        %v452 = vand.u32 %v451, 4294901760
        %v453 = vsub.f32 %v451, %v452
        %v454 = vand.u32 %v453, 4294901760
        %455 = vmatmul.f32.gmra.mxu0 %v454
        %v456 = vpop.f32.mrf.mxu0
        %v457 = vadd.f32 %v267, %v456
        %v458 = vand.u32 %v298, 4294901760
        %v459 = vsub.f32 %v298, %v458
        %v460 = vand.u32 %v459, 4294901760
        %v461 = vsub.f32 %v459, %v460
        %v462 = vand.u32 %v461, 4294901760
        %463 = vmatmul.f32.gmra.mxu0 %v462
        %v464 = vpop.f32.mrf.mxu0
        %v465 = vadd.f32 %v267, %v464
        %v466 = vand.u32 %v301, 4294901760
        %v467 = vsub.f32 %v301, %v466
        %v468 = vand.u32 %v467, 4294901760
        %v469 = vsub.f32 %v467, %v468
        %v470 = vand.u32 %v469, 4294901760
        %471 = vmatmul.f32.gmra.mxu0 %v470
        %v472 = vpop.f32.mrf.mxu0
        %v473 = vadd.f32 %v267, %v472
        %v474 = vand.u32 %v304, 4294901760
        %v475 = vsub.f32 %v304, %v474
        %v476 = vand.u32 %v475, 4294901760
        %v477 = vsub.f32 %v475, %v476
        %v478 = vand.u32 %v477, 4294901760
        %479 = vmatmul.f32.gmra.mxu0 %v478
        %v480 = vpop.f32.mrf.mxu0
        %v481 = vadd.f32 %v267, %v480
        %v482 = vand.u32 %v307, 4294901760
        %v483 = vsub.f32 %v307, %v482
        %v484 = vand.u32 %v483, 4294901760
        %v485 = vsub.f32 %v483, %v484
        %v486 = vand.u32 %v485, 4294901760
        %487 = vmatmul.f32.gmra.mxu0 %v486
        %v488 = vpop.f32.mrf.mxu0
        %v489 = vadd.f32 %v267, %v488
        %v490 = vand.u32 %v310, 4294901760
        %v491 = vsub.f32 %v310, %v490
        %v492 = vand.u32 %v491, 4294901760
        %v493 = vsub.f32 %v491, %v492
        %v494 = vand.u32 %v493, 4294901760
        %495 = vmatmul.f32.gmra.mxu0 %v494
        %v496 = vpop.f32.mrf.mxu0
        %v497 = vadd.f32 %v267, %v496
        %v498 = vand.u32 %v313, 4294901760
        %v499 = vsub.f32 %v313, %v498
        %v500 = vand.u32 %v499, 4294901760
        %v501 = vsub.f32 %v499, %v500
        %v502 = vand.u32 %v501, 4294901760
        %503 = vmatmul.f32.gmra.mxu0 %v502
        %v504 = vpop.f32.mrf.mxu0
        %v505 = vadd.f32 %v267, %v504
        %v506 = vand.u32 %v316, 4294901760
        %v507 = vsub.f32 %v316, %v506
        %v508 = vand.u32 %v507, 4294901760
        %v509 = vsub.f32 %v507, %v508
        %v510 = vand.u32 %v509, 4294901760
        %511 = vmatmul.f32.gmra.mxu0 %v510
        %v512 = vpop.f32.mrf.mxu0
        %v513 = vadd.f32 %v267, %v512
        %v514 = vand.u32 %v319, 4294901760
        %v515 = vsub.f32 %v319, %v514
        %v516 = vand.u32 %v515, 4294901760
        %v517 = vsub.f32 %v515, %v516
        %v518 = vand.u32 %v517, 4294901760
        %519 = vmatmul.f32.gmra.mxu0 %v518
        %v520 = vpop.f32.mrf.mxu0
        %v521 = vadd.f32 %v267, %v520
        %v522 = vand.u32 %v322, 4294901760
        %v523 = vsub.f32 %v322, %v522
        %v524 = vand.u32 %v523, 4294901760
        %v525 = vsub.f32 %v523, %v524
        %v526 = vand.u32 %v525, 4294901760
        %527 = vmatmul.f32.gmra.mxu0 %v526
        %v528 = vpop.f32.mrf.mxu0
        %v529 = vadd.f32 %v267, %v528
        %v530 = vand.u32 %v325, 4294901760
        %v531 = vsub.f32 %v325, %v530
        %v532 = vand.u32 %v531, 4294901760
        %v533 = vsub.f32 %v531, %v532
        %v534 = vand.u32 %v533, 4294901760
        %535 = vmatmul.f32.gmra.mxu0 %v534
        %v536 = vpop.f32.mrf.mxu0
        %v537 = vadd.f32 %v267, %v536
        %v538 = vand.u32 %v328, 4294901760
        %v539 = vsub.f32 %v328, %v538
        %v540 = vand.u32 %v539, 4294901760
        %v541 = vsub.f32 %v539, %v540
        %v542 = vand.u32 %v541, 4294901760
        %543 = vmatmul.f32.gmra.mxu0 %v542
        %v544 = vpop.f32.mrf.mxu0
        %v545 = vadd.f32 %v267, %v544
        %v546 = vand.u32 %v331, 4294901760
        %v547 = vsub.f32 %v331, %v546
        %v548 = vand.u32 %v547, 4294901760
        %v549 = vsub.f32 %v547, %v548
        %v550 = vand.u32 %v549, 4294901760
        %551 = vmatmul.f32.gmra.mxu0 %v550
        %v552 = vpop.f32.mrf.mxu0
        %v553 = vadd.f32 %v267, %v552
        %v554 = vand.u32 %v334, 4294901760
        %v555 = vsub.f32 %v334, %v554
        %v556 = vand.u32 %v555, 4294901760
        %v557 = vsub.f32 %v555, %v556
        %v558 = vand.u32 %v557, 4294901760
        %559 = vmatmul.f32.gmra.mxu0 %v558
        %v560 = vpop.f32.mrf.mxu0
        %v561 = vadd.f32 %v267, %v560
        %v562 = vand.u32 %v337, 4294901760
        %v563 = vsub.f32 %v337, %v562
        %v564 = vand.u32 %v563, 4294901760
        %v565 = vsub.f32 %v563, %v564
        %v566 = vand.u32 %v565, 4294901760
        %567 = vmatmul.f32.gmra.mxu0 %v566
        %v568 = vpop.f32.mrf.mxu0
        %v569 = vadd.f32 %v267, %v568
        %v570 = vand.u32 %v340, 4294901760
        %v571 = vsub.f32 %v340, %v570
        %v572 = vand.u32 %v571, 4294901760
        %v573 = vsub.f32 %v571, %v572
        %v574 = vand.u32 %v573, 4294901760
        %575 = vmatmul.f32.gmra.mxu0 %v574
        %v576 = vpop.f32.mrf.mxu0
        %v577 = vadd.f32 %v267, %v576
        %v578 = vand.u32 %v343, 4294901760
        %v579 = vsub.f32 %v343, %v578
        %v580 = vand.u32 %v579, 4294901760
        %v581 = vsub.f32 %v579, %v580
        %v582 = vand.u32 %v581, 4294901760
        %583 = vmatmul.f32.gmra.mxu0 %v582
        %v584 = vpop.f32.mrf.mxu0
        %v585 = vadd.f32 %v267, %v584
        %v586 = vand.u32 %v346, 4294901760
        %v587 = vsub.f32 %v346, %v586
        %v588 = vand.u32 %v587, 4294901760
        %v589 = vsub.f32 %v587, %v588
        %v590 = vand.u32 %v589, 4294901760
        %591 = vmatmul.f32.gmra.mxu0 %v590
        %v592 = vpop.f32.mrf.mxu0
        %v593 = vadd.f32 %v267, %v592
        %v594 = vand.u32 %v349, 4294901760
        %v595 = vsub.f32 %v349, %v594
        %v596 = vand.u32 %v595, 4294901760
        %v597 = vsub.f32 %v595, %v596
        %v598 = vand.u32 %v597, 4294901760
        %599 = vmatmul.f32.gmra.mxu0 %v598
        %v600 = vpop.f32.mrf.mxu0
        %v601 = vadd.f32 %v267, %v600
        %v602 = vand.u32 %v352, 4294901760
        %v603 = vsub.f32 %v352, %v602
        %v604 = vand.u32 %v603, 4294901760
        %v605 = vsub.f32 %v603, %v604
        %v606 = vand.u32 %v605, 4294901760
        %607 = vmatmul.f32.gmra.mxu0 %v606
        %v608 = vpop.f32.mrf.mxu0
        %v609 = vadd.f32 %v267, %v608
        %v610 = vand.u32 %v355, 4294901760
        %v611 = vsub.f32 %v355, %v610
        %v612 = vand.u32 %v611, 4294901760
        %v613 = vsub.f32 %v611, %v612
        %v614 = vand.u32 %v613, 4294901760
        %615 = vmatmul.f32.gmra.mxu0 %v614
        %v616 = vpop.f32.mrf.mxu0
        %v617 = vadd.f32 %v267, %v616
        %v618 = vand.u32 %v358, 4294901760
        %v619 = vsub.f32 %v358, %v618
        %v620 = vand.u32 %v619, 4294901760
        %v621 = vsub.f32 %v619, %v620
        %v622 = vand.u32 %v621, 4294901760
        %623 = vmatmul.f32.gmra.mxu0 %v622
        %v624 = vpop.f32.mrf.mxu0
        %v625 = vadd.f32 %v267, %v624
        %v626 = vand.u32 %v361, 4294901760
        %v627 = vsub.f32 %v361, %v626
        %v628 = vand.u32 %v627, 4294901760
        %v629 = vsub.f32 %v627, %v628
        %v630 = vand.u32 %v629, 4294901760
        %631 = vmatmul.f32.gmra.mxu0 %v630
        %v632 = vpop.f32.mrf.mxu0
        %v633 = vadd.f32 %v267, %v632
        %v634 = vand.u32 %v364, 4294901760
        %v635 = vsub.f32 %v364, %v634
        %v636 = vand.u32 %v635, 4294901760
        %v637 = vsub.f32 %v635, %v636
        %v638 = vand.u32 %v637, 4294901760
        %639 = vmatmul.f32.gmra.mxu0 %v638
        %v640 = vpop.f32.mrf.mxu0
        %v641 = vadd.f32 %v267, %v640
        %642 = vdwg.mxu0
        %643 = vmatpush.msra.mxu0 0.0
        %644 = vmatpush.msra.mxu0 0.0
        %645 = vmatpush.msra.mxu0 0.0
        %646 = vmatpush.msra.mxu0 0.0
        %647 = vmatpush.msra.mxu0 0.0
        %648 = vmatpush.msra.mxu0 0.0
        %649 = vmatpush.msra.mxu0 0.0
        %650 = vmatpush.msra.mxu0 0.0
        %651 = vmatpush.msra.mxu0 0.0
        %652 = vmatpush.msra.mxu0 0.0
        %653 = vmatpush.msra.mxu0 0.0
        %654 = vmatpush.msra.mxu0 0.0
        %v655 = vand.u32 %v230, 4294901760
        %v656 = vsub.f32 %v230, %v655
        %v657 = vand.u32 %v656, 4294901760
        %v658 = vsub.f32 %v656, %v657
        %v659 = vand.u32 %v658, 4294901760
        %660 = vmatpush.msra.mxu0 %v659
        %v661 = vand.u32 %v229, 4294901760
        %v662 = vsub.f32 %v229, %v661
        %v663 = vand.u32 %v662, 4294901760
        %v664 = vsub.f32 %v662, %v663
        %v665 = vand.u32 %v664, 4294901760
        %666 = vmatpush.msra.mxu0 %v665
        %v667 = vand.u32 %v228, 4294901760
        %v668 = vsub.f32 %v228, %v667
        %v669 = vand.u32 %v668, 4294901760
        %v670 = vsub.f32 %v668, %v669
        %v671 = vand.u32 %v670, 4294901760
        %672 = vmatpush.msra.mxu0 %v671
        %v673 = vand.u32 %v227, 4294901760
        %v674 = vsub.f32 %v227, %v673
        %v675 = vand.u32 %v674, 4294901760
        %v676 = vsub.f32 %v674, %v675
        %v677 = vand.u32 %v676, 4294901760
        %678 = vmatpush.msra.mxu0 %v677
        %v679 = vand.u32 %v271, 4294901760
        %680 = vmatmul.f32.gmra.mxu0 %v679
        %v681 = vpop.f32.mrf.mxu0
        %v682 = vadd.f32 %v393, %v681
        %v683 = vand.u32 %v274, 4294901760
        %684 = vmatmul.f32.gmra.mxu0 %v683
        %v685 = vpop.f32.mrf.mxu0
        %v686 = vadd.f32 %v401, %v685
        %v687 = vand.u32 %v277, 4294901760
        %688 = vmatmul.f32.gmra.mxu0 %v687
        %v689 = vpop.f32.mrf.mxu0
        %v690 = vadd.f32 %v409, %v689
        %v691 = vand.u32 %v280, 4294901760
        %692 = vmatmul.f32.gmra.mxu0 %v691
        %v693 = vpop.f32.mrf.mxu0
        %v694 = vadd.f32 %v417, %v693
        %v695 = vand.u32 %v283, 4294901760
        %696 = vmatmul.f32.gmra.mxu0 %v695
        %v697 = vpop.f32.mrf.mxu0
        %v698 = vadd.f32 %v425, %v697
        %v699 = vand.u32 %v286, 4294901760
        %700 = vmatmul.f32.gmra.mxu0 %v699
        %v701 = vpop.f32.mrf.mxu0
        %v702 = vadd.f32 %v433, %v701
        %v703 = vand.u32 %v289, 4294901760
        %704 = vmatmul.f32.gmra.mxu0 %v703
        %v705 = vpop.f32.mrf.mxu0
        %v706 = vadd.f32 %v441, %v705
        %v707 = vand.u32 %v292, 4294901760
        %708 = vmatmul.f32.gmra.mxu0 %v707
        %v709 = vpop.f32.mrf.mxu0
        %v710 = vadd.f32 %v449, %v709
        %v711 = vand.u32 %v295, 4294901760
        %712 = vmatmul.f32.gmra.mxu0 %v711
        %v713 = vpop.f32.mrf.mxu0
        %v714 = vadd.f32 %v457, %v713
        %v715 = vand.u32 %v298, 4294901760
        %716 = vmatmul.f32.gmra.mxu0 %v715
        %v717 = vpop.f32.mrf.mxu0
        %v718 = vadd.f32 %v465, %v717
        %v719 = vand.u32 %v301, 4294901760
        %720 = vmatmul.f32.gmra.mxu0 %v719
        %v721 = vpop.f32.mrf.mxu0
        %v722 = vadd.f32 %v473, %v721
        %v723 = vand.u32 %v304, 4294901760
        %724 = vmatmul.f32.gmra.mxu0 %v723
        %v725 = vpop.f32.mrf.mxu0
        %v726 = vadd.f32 %v481, %v725
        %v727 = vand.u32 %v307, 4294901760
        %728 = vmatmul.f32.gmra.mxu0 %v727
        %v729 = vpop.f32.mrf.mxu0
        %v730 = vadd.f32 %v489, %v729
        %v731 = vand.u32 %v310, 4294901760
        %732 = vmatmul.f32.gmra.mxu0 %v731
        %v733 = vpop.f32.mrf.mxu0
        %v734 = vadd.f32 %v497, %v733
        %v735 = vand.u32 %v313, 4294901760
        %736 = vmatmul.f32.gmra.mxu0 %v735
        %v737 = vpop.f32.mrf.mxu0
        %v738 = vadd.f32 %v505, %v737
        %v739 = vand.u32 %v316, 4294901760
        %740 = vmatmul.f32.gmra.mxu0 %v739
        %v741 = vpop.f32.mrf.mxu0
        %v742 = vadd.f32 %v513, %v741
        %v743 = vand.u32 %v319, 4294901760
        %744 = vmatmul.f32.gmra.mxu0 %v743
        %v745 = vpop.f32.mrf.mxu0
        %v746 = vadd.f32 %v521, %v745
        %v747 = vand.u32 %v322, 4294901760
        %748 = vmatmul.f32.gmra.mxu0 %v747
        %v749 = vpop.f32.mrf.mxu0
        %v750 = vadd.f32 %v529, %v749
        %v751 = vand.u32 %v325, 4294901760
        %752 = vmatmul.f32.gmra.mxu0 %v751
        %v753 = vpop.f32.mrf.mxu0
        %v754 = vadd.f32 %v537, %v753
        %v755 = vand.u32 %v328, 4294901760
        %756 = vmatmul.f32.gmra.mxu0 %v755
        %v757 = vpop.f32.mrf.mxu0
        %v758 = vadd.f32 %v545, %v757
        %v759 = vand.u32 %v331, 4294901760
        %760 = vmatmul.f32.gmra.mxu0 %v759
        %v761 = vpop.f32.mrf.mxu0
        %v762 = vadd.f32 %v553, %v761
        %v763 = vand.u32 %v334, 4294901760
        %764 = vmatmul.f32.gmra.mxu0 %v763
        %v765 = vpop.f32.mrf.mxu0
        %v766 = vadd.f32 %v561, %v765
        %v767 = vand.u32 %v337, 4294901760
        %768 = vmatmul.f32.gmra.mxu0 %v767
        %v769 = vpop.f32.mrf.mxu0
        %v770 = vadd.f32 %v569, %v769
        %v771 = vand.u32 %v340, 4294901760
        %772 = vmatmul.f32.gmra.mxu0 %v771
        %v773 = vpop.f32.mrf.mxu0
        %v774 = vadd.f32 %v577, %v773
        %v775 = vand.u32 %v343, 4294901760
        %776 = vmatmul.f32.gmra.mxu0 %v775
        %v777 = vpop.f32.mrf.mxu0
        %v778 = vadd.f32 %v585, %v777
        %v779 = vand.u32 %v346, 4294901760
        %780 = vmatmul.f32.gmra.mxu0 %v779
        %v781 = vpop.f32.mrf.mxu0
        %v782 = vadd.f32 %v593, %v781
        %v783 = vand.u32 %v349, 4294901760
        %784 = vmatmul.f32.gmra.mxu0 %v783
        %v785 = vpop.f32.mrf.mxu0
        %v786 = vadd.f32 %v601, %v785
        %v787 = vand.u32 %v352, 4294901760
        %788 = vmatmul.f32.gmra.mxu0 %v787
        %v789 = vpop.f32.mrf.mxu0
        %v790 = vadd.f32 %v609, %v789
        %v791 = vand.u32 %v355, 4294901760
        %792 = vmatmul.f32.gmra.mxu0 %v791
        %v793 = vpop.f32.mrf.mxu0
        %v794 = vadd.f32 %v617, %v793
        %v795 = vand.u32 %v358, 4294901760
        %796 = vmatmul.f32.gmra.mxu0 %v795
        %v797 = vpop.f32.mrf.mxu0
        %v798 = vadd.f32 %v625, %v797
        %v799 = vand.u32 %v361, 4294901760
        %800 = vmatmul.f32.gmra.mxu0 %v799
        %v801 = vpop.f32.mrf.mxu0
        %v802 = vadd.f32 %v633, %v801
        %v803 = vand.u32 %v364, 4294901760
        %804 = vmatmul.f32.gmra.mxu0 %v803
        %v805 = vpop.f32.mrf.mxu0
        %v806 = vadd.f32 %v641, %v805
        %807 = vdwg.mxu0
        %808 = vmatpush.msra.mxu0 0.0
        %809 = vmatpush.msra.mxu0 0.0
        %810 = vmatpush.msra.mxu0 0.0
        %811 = vmatpush.msra.mxu0 0.0
        %812 = vmatpush.msra.mxu0 0.0
        %813 = vmatpush.msra.mxu0 0.0
        %814 = vmatpush.msra.mxu0 0.0
        %815 = vmatpush.msra.mxu0 0.0
        %816 = vmatpush.msra.mxu0 0.0
        %817 = vmatpush.msra.mxu0 0.0
        %818 = vmatpush.msra.mxu0 0.0
        %819 = vmatpush.msra.mxu0 0.0
        %v820 = vand.u32 %v230, 4294901760
        %v821 = vsub.f32 %v230, %v820
        %822 = vmatpush.msra.mxu0 %v821
        %v823 = vand.u32 %v229, 4294901760
        %v824 = vsub.f32 %v229, %v823
        %825 = vmatpush.msra.mxu0 %v824
        %v826 = vand.u32 %v228, 4294901760
        %v827 = vsub.f32 %v228, %v826
        %828 = vmatpush.msra.mxu0 %v827
        %v829 = vand.u32 %v227, 4294901760
        %v830 = vsub.f32 %v227, %v829
        %831 = vmatpush.msra.mxu0 %v830
        %v832 = vand.u32 %v271, 4294901760
        %v833 = vsub.f32 %v271, %v832
        %834 = vmatmul.f32.gmra.mxu0 %v833
        %v835 = vpop.f32.mrf.mxu0
        %v836 = vadd.f32 %v682, %v835
        %v837 = vand.u32 %v274, 4294901760
        %v838 = vsub.f32 %v274, %v837
        %839 = vmatmul.f32.gmra.mxu0 %v838
        %v840 = vpop.f32.mrf.mxu0
        %v841 = vadd.f32 %v686, %v840
        %v842 = vand.u32 %v277, 4294901760
        %v843 = vsub.f32 %v277, %v842
        %844 = vmatmul.f32.gmra.mxu0 %v843
        %v845 = vpop.f32.mrf.mxu0
        %v846 = vadd.f32 %v690, %v845
        %v847 = vand.u32 %v280, 4294901760
        %v848 = vsub.f32 %v280, %v847
        %849 = vmatmul.f32.gmra.mxu0 %v848
        %v850 = vpop.f32.mrf.mxu0
        %v851 = vadd.f32 %v694, %v850
        %v852 = vand.u32 %v283, 4294901760
        %v853 = vsub.f32 %v283, %v852
        %854 = vmatmul.f32.gmra.mxu0 %v853
        %v855 = vpop.f32.mrf.mxu0
        %v856 = vadd.f32 %v698, %v855
        %v857 = vand.u32 %v286, 4294901760
        %v858 = vsub.f32 %v286, %v857
        %859 = vmatmul.f32.gmra.mxu0 %v858
        %v860 = vpop.f32.mrf.mxu0
        %v861 = vadd.f32 %v702, %v860
        %v862 = vand.u32 %v289, 4294901760
        %v863 = vsub.f32 %v289, %v862
        %864 = vmatmul.f32.gmra.mxu0 %v863
        %v865 = vpop.f32.mrf.mxu0
        %v866 = vadd.f32 %v706, %v865
        %v867 = vand.u32 %v292, 4294901760
        %v868 = vsub.f32 %v292, %v867
        %869 = vmatmul.f32.gmra.mxu0 %v868
        %v870 = vpop.f32.mrf.mxu0
        %v871 = vadd.f32 %v710, %v870
        %v872 = vand.u32 %v295, 4294901760
        %v873 = vsub.f32 %v295, %v872
        %874 = vmatmul.f32.gmra.mxu0 %v873
        %v875 = vpop.f32.mrf.mxu0
        %v876 = vadd.f32 %v714, %v875
        %v877 = vand.u32 %v298, 4294901760
        %v878 = vsub.f32 %v298, %v877
        %879 = vmatmul.f32.gmra.mxu0 %v878
        %v880 = vpop.f32.mrf.mxu0
        %v881 = vadd.f32 %v718, %v880
        %v882 = vand.u32 %v301, 4294901760
        %v883 = vsub.f32 %v301, %v882
        %884 = vmatmul.f32.gmra.mxu0 %v883
        %v885 = vpop.f32.mrf.mxu0
        %v886 = vadd.f32 %v722, %v885
        %v887 = vand.u32 %v304, 4294901760
        %v888 = vsub.f32 %v304, %v887
        %889 = vmatmul.f32.gmra.mxu0 %v888
        %v890 = vpop.f32.mrf.mxu0
        %v891 = vadd.f32 %v726, %v890
        %v892 = vand.u32 %v307, 4294901760
        %v893 = vsub.f32 %v307, %v892
        %894 = vmatmul.f32.gmra.mxu0 %v893
        %v895 = vpop.f32.mrf.mxu0
        %v896 = vadd.f32 %v730, %v895
        %v897 = vand.u32 %v310, 4294901760
        %v898 = vsub.f32 %v310, %v897
        %899 = vmatmul.f32.gmra.mxu0 %v898
        %v900 = vpop.f32.mrf.mxu0
        %v901 = vadd.f32 %v734, %v900
        %v902 = vand.u32 %v313, 4294901760
        %v903 = vsub.f32 %v313, %v902
        %904 = vmatmul.f32.gmra.mxu0 %v903
        %v905 = vpop.f32.mrf.mxu0
        %v906 = vadd.f32 %v738, %v905
        %v907 = vand.u32 %v316, 4294901760
        %v908 = vsub.f32 %v316, %v907
        %909 = vmatmul.f32.gmra.mxu0 %v908
        %v910 = vpop.f32.mrf.mxu0
        %v911 = vadd.f32 %v742, %v910
        %v912 = vand.u32 %v319, 4294901760
        %v913 = vsub.f32 %v319, %v912
        %914 = vmatmul.f32.gmra.mxu0 %v913
        %v915 = vpop.f32.mrf.mxu0
        %v916 = vadd.f32 %v746, %v915
        %v917 = vand.u32 %v322, 4294901760
        %v918 = vsub.f32 %v322, %v917
        %919 = vmatmul.f32.gmra.mxu0 %v918
        %v920 = vpop.f32.mrf.mxu0
        %v921 = vadd.f32 %v750, %v920
        %v922 = vand.u32 %v325, 4294901760
        %v923 = vsub.f32 %v325, %v922
        %924 = vmatmul.f32.gmra.mxu0 %v923
        %v925 = vpop.f32.mrf.mxu0
        %v926 = vadd.f32 %v754, %v925
        %v927 = vand.u32 %v328, 4294901760
        %v928 = vsub.f32 %v328, %v927
        %929 = vmatmul.f32.gmra.mxu0 %v928
        %v930 = vpop.f32.mrf.mxu0
        %v931 = vadd.f32 %v758, %v930
        %v932 = vand.u32 %v331, 4294901760
        %v933 = vsub.f32 %v331, %v932
        %934 = vmatmul.f32.gmra.mxu0 %v933
        %v935 = vpop.f32.mrf.mxu0
        %v936 = vadd.f32 %v762, %v935
        %v937 = vand.u32 %v334, 4294901760
        %v938 = vsub.f32 %v334, %v937
        %939 = vmatmul.f32.gmra.mxu0 %v938
        %v940 = vpop.f32.mrf.mxu0
        %v941 = vadd.f32 %v766, %v940
        %v942 = vand.u32 %v337, 4294901760
        %v943 = vsub.f32 %v337, %v942
        %944 = vmatmul.f32.gmra.mxu0 %v943
        %v945 = vpop.f32.mrf.mxu0
        %v946 = vadd.f32 %v770, %v945
        %v947 = vand.u32 %v340, 4294901760
        %v948 = vsub.f32 %v340, %v947
        %949 = vmatmul.f32.gmra.mxu0 %v948
        %v950 = vpop.f32.mrf.mxu0
        %v951 = vadd.f32 %v774, %v950
        %v952 = vand.u32 %v343, 4294901760
        %v953 = vsub.f32 %v343, %v952
        %954 = vmatmul.f32.gmra.mxu0 %v953
        %v955 = vpop.f32.mrf.mxu0
        %v956 = vadd.f32 %v778, %v955
        %v957 = vand.u32 %v346, 4294901760
        %v958 = vsub.f32 %v346, %v957
        %959 = vmatmul.f32.gmra.mxu0 %v958
        %v960 = vpop.f32.mrf.mxu0
        %v961 = vadd.f32 %v782, %v960
        %v962 = vand.u32 %v349, 4294901760
        %v963 = vsub.f32 %v349, %v962
        %964 = vmatmul.f32.gmra.mxu0 %v963
        %v965 = vpop.f32.mrf.mxu0
        %v966 = vadd.f32 %v786, %v965
        %v967 = vand.u32 %v352, 4294901760
        %v968 = vsub.f32 %v352, %v967
        %969 = vmatmul.f32.gmra.mxu0 %v968
        %v970 = vpop.f32.mrf.mxu0
        %v971 = vadd.f32 %v790, %v970
        %v972 = vand.u32 %v355, 4294901760
        %v973 = vsub.f32 %v355, %v972
        %974 = vmatmul.f32.gmra.mxu0 %v973
        %v975 = vpop.f32.mrf.mxu0
        %v976 = vadd.f32 %v794, %v975
        %v977 = vand.u32 %v358, 4294901760
        %v978 = vsub.f32 %v358, %v977
        %979 = vmatmul.f32.gmra.mxu0 %v978
        %v980 = vpop.f32.mrf.mxu0
        %v981 = vadd.f32 %v798, %v980
        %v982 = vand.u32 %v361, 4294901760
        %v983 = vsub.f32 %v361, %v982
        %984 = vmatmul.f32.gmra.mxu0 %v983
        %v985 = vpop.f32.mrf.mxu0
        %v986 = vadd.f32 %v802, %v985
        %v987 = vand.u32 %v364, 4294901760
        %v988 = vsub.f32 %v364, %v987
        %989 = vmatmul.f32.gmra.mxu0 %v988
        %v990 = vpop.f32.mrf.mxu0
        %v991 = vadd.f32 %v806, %v990
        %992 = vdwg.mxu0
        %993 = vmatpush.msra.mxu0 0.0
        %994 = vmatpush.msra.mxu0 0.0
        %995 = vmatpush.msra.mxu0 0.0
        %996 = vmatpush.msra.mxu0 0.0
        %997 = vmatpush.msra.mxu0 0.0
        %998 = vmatpush.msra.mxu0 0.0
        %999 = vmatpush.msra.mxu0 0.0
        %1000 = vmatpush.msra.mxu0 0.0
        %1001 = vmatpush.msra.mxu0 0.0
        %1002 = vmatpush.msra.mxu0 0.0
        %1003 = vmatpush.msra.mxu0 0.0
        %1004 = vmatpush.msra.mxu0 0.0
        %v1005 = vand.u32 %v230, 4294901760
        %1006 = vmatpush.msra.mxu0 %v1005
        %v1007 = vand.u32 %v229, 4294901760
        %1008 = vmatpush.msra.mxu0 %v1007
        %v1009 = vand.u32 %v228, 4294901760
        %1010 = vmatpush.msra.mxu0 %v1009
        %v1011 = vand.u32 %v227, 4294901760
        %1012 = vmatpush.msra.mxu0 %v1011
        %v1013 = vand.u32 %v271, 4294901760
        %v1014 = vsub.f32 %v271, %v1013
        %v1015 = vand.u32 %v1014, 4294901760
        %1016 = vmatmul.f32.gmra.mxu0 %v1015
        %v1017 = vpop.f32.mrf.mxu0
        %v1018 = vadd.f32 %v836, %v1017
        %v1019 = vand.u32 %v274, 4294901760
        %v1020 = vsub.f32 %v274, %v1019
        %v1021 = vand.u32 %v1020, 4294901760
        %1022 = vmatmul.f32.gmra.mxu0 %v1021
        %v1023 = vpop.f32.mrf.mxu0
        %v1024 = vadd.f32 %v841, %v1023
        %v1025 = vand.u32 %v277, 4294901760
        %v1026 = vsub.f32 %v277, %v1025
        %v1027 = vand.u32 %v1026, 4294901760
        %1028 = vmatmul.f32.gmra.mxu0 %v1027
        %v1029 = vpop.f32.mrf.mxu0
        %v1030 = vadd.f32 %v846, %v1029
        %v1031 = vand.u32 %v280, 4294901760
        %v1032 = vsub.f32 %v280, %v1031
        %v1033 = vand.u32 %v1032, 4294901760
        %1034 = vmatmul.f32.gmra.mxu0 %v1033
        %v1035 = vpop.f32.mrf.mxu0
        %v1036 = vadd.f32 %v851, %v1035
        %v1037 = vand.u32 %v283, 4294901760
        %v1038 = vsub.f32 %v283, %v1037
        %v1039 = vand.u32 %v1038, 4294901760
        %1040 = vmatmul.f32.gmra.mxu0 %v1039
        %v1041 = vpop.f32.mrf.mxu0
        %v1042 = vadd.f32 %v856, %v1041
        %v1043 = vand.u32 %v286, 4294901760
        %v1044 = vsub.f32 %v286, %v1043
        %v1045 = vand.u32 %v1044, 4294901760
        %1046 = vmatmul.f32.gmra.mxu0 %v1045
        %v1047 = vpop.f32.mrf.mxu0
        %v1048 = vadd.f32 %v861, %v1047
        %v1049 = vand.u32 %v289, 4294901760
        %v1050 = vsub.f32 %v289, %v1049
        %v1051 = vand.u32 %v1050, 4294901760
        %1052 = vmatmul.f32.gmra.mxu0 %v1051
        %v1053 = vpop.f32.mrf.mxu0
        %v1054 = vadd.f32 %v866, %v1053
        %v1055 = vand.u32 %v292, 4294901760
        %v1056 = vsub.f32 %v292, %v1055
        %v1057 = vand.u32 %v1056, 4294901760
        %1058 = vmatmul.f32.gmra.mxu0 %v1057
        %v1059 = vpop.f32.mrf.mxu0
        %v1060 = vadd.f32 %v871, %v1059
        %v1061 = vand.u32 %v295, 4294901760
        %v1062 = vsub.f32 %v295, %v1061
        %v1063 = vand.u32 %v1062, 4294901760
        %1064 = vmatmul.f32.gmra.mxu0 %v1063
        %v1065 = vpop.f32.mrf.mxu0
        %v1066 = vadd.f32 %v876, %v1065
        %v1067 = vand.u32 %v298, 4294901760
        %v1068 = vsub.f32 %v298, %v1067
        %v1069 = vand.u32 %v1068, 4294901760
        %1070 = vmatmul.f32.gmra.mxu0 %v1069
        %v1071 = vpop.f32.mrf.mxu0
        %v1072 = vadd.f32 %v881, %v1071
        %v1073 = vand.u32 %v301, 4294901760
        %v1074 = vsub.f32 %v301, %v1073
        %v1075 = vand.u32 %v1074, 4294901760
        %1076 = vmatmul.f32.gmra.mxu0 %v1075
        %v1077 = vpop.f32.mrf.mxu0
        %v1078 = vadd.f32 %v886, %v1077
        %v1079 = vand.u32 %v304, 4294901760
        %v1080 = vsub.f32 %v304, %v1079
        %v1081 = vand.u32 %v1080, 4294901760
        %1082 = vmatmul.f32.gmra.mxu0 %v1081
        %v1083 = vpop.f32.mrf.mxu0
        %v1084 = vadd.f32 %v891, %v1083
        %v1085 = vand.u32 %v307, 4294901760
        %v1086 = vsub.f32 %v307, %v1085
        %v1087 = vand.u32 %v1086, 4294901760
        %1088 = vmatmul.f32.gmra.mxu0 %v1087
        %v1089 = vpop.f32.mrf.mxu0
        %v1090 = vadd.f32 %v896, %v1089
        %v1091 = vand.u32 %v310, 4294901760
        %v1092 = vsub.f32 %v310, %v1091
        %v1093 = vand.u32 %v1092, 4294901760
        %1094 = vmatmul.f32.gmra.mxu0 %v1093
        %v1095 = vpop.f32.mrf.mxu0
        %v1096 = vadd.f32 %v901, %v1095
        %v1097 = vand.u32 %v313, 4294901760
        %v1098 = vsub.f32 %v313, %v1097
        %v1099 = vand.u32 %v1098, 4294901760
        %1100 = vmatmul.f32.gmra.mxu0 %v1099
        %v1101 = vpop.f32.mrf.mxu0
        %v1102 = vadd.f32 %v906, %v1101
        %v1103 = vand.u32 %v316, 4294901760
        %v1104 = vsub.f32 %v316, %v1103
        %v1105 = vand.u32 %v1104, 4294901760
        %1106 = vmatmul.f32.gmra.mxu0 %v1105
        %v1107 = vpop.f32.mrf.mxu0
        %v1108 = vadd.f32 %v911, %v1107
        %v1109 = vand.u32 %v319, 4294901760
        %v1110 = vsub.f32 %v319, %v1109
        %v1111 = vand.u32 %v1110, 4294901760
        %1112 = vmatmul.f32.gmra.mxu0 %v1111
        %v1113 = vpop.f32.mrf.mxu0
        %v1114 = vadd.f32 %v916, %v1113
        %v1115 = vand.u32 %v322, 4294901760
        %v1116 = vsub.f32 %v322, %v1115
        %v1117 = vand.u32 %v1116, 4294901760
        %1118 = vmatmul.f32.gmra.mxu0 %v1117
        %v1119 = vpop.f32.mrf.mxu0
        %v1120 = vadd.f32 %v921, %v1119
        %v1121 = vand.u32 %v325, 4294901760
        %v1122 = vsub.f32 %v325, %v1121
        %v1123 = vand.u32 %v1122, 4294901760
        %1124 = vmatmul.f32.gmra.mxu0 %v1123
        %v1125 = vpop.f32.mrf.mxu0
        %v1126 = vadd.f32 %v926, %v1125
        %v1127 = vand.u32 %v328, 4294901760
        %v1128 = vsub.f32 %v328, %v1127
        %v1129 = vand.u32 %v1128, 4294901760
        %1130 = vmatmul.f32.gmra.mxu0 %v1129
        %v1131 = vpop.f32.mrf.mxu0
        %v1132 = vadd.f32 %v931, %v1131
        %v1133 = vand.u32 %v331, 4294901760
        %v1134 = vsub.f32 %v331, %v1133
        %v1135 = vand.u32 %v1134, 4294901760
        %1136 = vmatmul.f32.gmra.mxu0 %v1135
        %v1137 = vpop.f32.mrf.mxu0
        %v1138 = vadd.f32 %v936, %v1137
        %v1139 = vand.u32 %v334, 4294901760
        %v1140 = vsub.f32 %v334, %v1139
        %v1141 = vand.u32 %v1140, 4294901760
        %1142 = vmatmul.f32.gmra.mxu0 %v1141
        %v1143 = vpop.f32.mrf.mxu0
        %v1144 = vadd.f32 %v941, %v1143
        %v1145 = vand.u32 %v337, 4294901760
        %v1146 = vsub.f32 %v337, %v1145
        %v1147 = vand.u32 %v1146, 4294901760
        %1148 = vmatmul.f32.gmra.mxu0 %v1147
        %v1149 = vpop.f32.mrf.mxu0
        %v1150 = vadd.f32 %v946, %v1149
        %v1151 = vand.u32 %v340, 4294901760
        %v1152 = vsub.f32 %v340, %v1151
        %v1153 = vand.u32 %v1152, 4294901760
        %1154 = vmatmul.f32.gmra.mxu0 %v1153
        %v1155 = vpop.f32.mrf.mxu0
        %v1156 = vadd.f32 %v951, %v1155
        %v1157 = vand.u32 %v343, 4294901760
        %v1158 = vsub.f32 %v343, %v1157
        %v1159 = vand.u32 %v1158, 4294901760
        %1160 = vmatmul.f32.gmra.mxu0 %v1159
        %v1161 = vpop.f32.mrf.mxu0
        %v1162 = vadd.f32 %v956, %v1161
        %v1163 = vand.u32 %v346, 4294901760
        %v1164 = vsub.f32 %v346, %v1163
        %v1165 = vand.u32 %v1164, 4294901760
        %1166 = vmatmul.f32.gmra.mxu0 %v1165
        %v1167 = vpop.f32.mrf.mxu0
        %v1168 = vadd.f32 %v961, %v1167
        %v1169 = vand.u32 %v349, 4294901760
        %v1170 = vsub.f32 %v349, %v1169
        %v1171 = vand.u32 %v1170, 4294901760
        %1172 = vmatmul.f32.gmra.mxu0 %v1171
        %v1173 = vpop.f32.mrf.mxu0
        %v1174 = vadd.f32 %v966, %v1173
        %v1175 = vand.u32 %v352, 4294901760
        %v1176 = vsub.f32 %v352, %v1175
        %v1177 = vand.u32 %v1176, 4294901760
        %1178 = vmatmul.f32.gmra.mxu0 %v1177
        %v1179 = vpop.f32.mrf.mxu0
        %v1180 = vadd.f32 %v971, %v1179
        %v1181 = vand.u32 %v355, 4294901760
        %v1182 = vsub.f32 %v355, %v1181
        %v1183 = vand.u32 %v1182, 4294901760
        %1184 = vmatmul.f32.gmra.mxu0 %v1183
        %v1185 = vpop.f32.mrf.mxu0
        %v1186 = vadd.f32 %v976, %v1185
        %v1187 = vand.u32 %v358, 4294901760
        %v1188 = vsub.f32 %v358, %v1187
        %v1189 = vand.u32 %v1188, 4294901760
        %1190 = vmatmul.f32.gmra.mxu0 %v1189
        %v1191 = vpop.f32.mrf.mxu0
        %v1192 = vadd.f32 %v981, %v1191
        %v1193 = vand.u32 %v361, 4294901760
        %v1194 = vsub.f32 %v361, %v1193
        %v1195 = vand.u32 %v1194, 4294901760
        %1196 = vmatmul.f32.gmra.mxu0 %v1195
        %v1197 = vpop.f32.mrf.mxu0
        %v1198 = vadd.f32 %v986, %v1197
        %v1199 = vand.u32 %v364, 4294901760
        %v1200 = vsub.f32 %v364, %v1199
        %v1201 = vand.u32 %v1200, 4294901760
        %1202 = vmatmul.f32.gmra.mxu0 %v1201
        %v1203 = vpop.f32.mrf.mxu0
        %v1204 = vadd.f32 %v991, %v1203
        %1205 = vdwg.mxu0
        %1206 = vmatpush.msra.mxu0 0.0
        %1207 = vmatpush.msra.mxu0 0.0
        %1208 = vmatpush.msra.mxu0 0.0
        %1209 = vmatpush.msra.mxu0 0.0
        %1210 = vmatpush.msra.mxu0 0.0
        %1211 = vmatpush.msra.mxu0 0.0
        %1212 = vmatpush.msra.mxu0 0.0
        %1213 = vmatpush.msra.mxu0 0.0
        %1214 = vmatpush.msra.mxu0 0.0
        %1215 = vmatpush.msra.mxu0 0.0
        %1216 = vmatpush.msra.mxu0 0.0
        %1217 = vmatpush.msra.mxu0 0.0
        %v1218 = vand.u32 %v230, 4294901760
        %v1219 = vsub.f32 %v230, %v1218
        %v1220 = vand.u32 %v1219, 4294901760
        %1221 = vmatpush.msra.mxu0 %v1220
        %v1222 = vand.u32 %v229, 4294901760
        %v1223 = vsub.f32 %v229, %v1222
        %v1224 = vand.u32 %v1223, 4294901760
        %1225 = vmatpush.msra.mxu0 %v1224
        %v1226 = vand.u32 %v228, 4294901760
        %v1227 = vsub.f32 %v228, %v1226
        %v1228 = vand.u32 %v1227, 4294901760
        %1229 = vmatpush.msra.mxu0 %v1228
        %v1230 = vand.u32 %v227, 4294901760
        %v1231 = vsub.f32 %v227, %v1230
        %v1232 = vand.u32 %v1231, 4294901760
        %1233 = vmatpush.msra.mxu0 %v1232
        %v1234 = vand.u32 %v271, 4294901760
        %1235 = vmatmul.f32.gmra.mxu0 %v1234
        %v1236 = vpop.f32.mrf.mxu0
        %v1237 = vadd.f32 %v1018, %v1236
        %v1238 = vand.u32 %v274, 4294901760
        %1239 = vmatmul.f32.gmra.mxu0 %v1238
        %v1240 = vpop.f32.mrf.mxu0
        %v1241 = vadd.f32 %v1024, %v1240
        %v1242 = vand.u32 %v277, 4294901760
        %1243 = vmatmul.f32.gmra.mxu0 %v1242
        %v1244 = vpop.f32.mrf.mxu0
        %v1245 = vadd.f32 %v1030, %v1244
        %v1246 = vand.u32 %v280, 4294901760
        %1247 = vmatmul.f32.gmra.mxu0 %v1246
        %v1248 = vpop.f32.mrf.mxu0
        %v1249 = vadd.f32 %v1036, %v1248
        %v1250 = vand.u32 %v283, 4294901760
        %1251 = vmatmul.f32.gmra.mxu0 %v1250
        %v1252 = vpop.f32.mrf.mxu0
        %v1253 = vadd.f32 %v1042, %v1252
        %v1254 = vand.u32 %v286, 4294901760
        %1255 = vmatmul.f32.gmra.mxu0 %v1254
        %v1256 = vpop.f32.mrf.mxu0
        %v1257 = vadd.f32 %v1048, %v1256
        %v1258 = vand.u32 %v289, 4294901760
        %1259 = vmatmul.f32.gmra.mxu0 %v1258
        %v1260 = vpop.f32.mrf.mxu0
        %v1261 = vadd.f32 %v1054, %v1260
        %v1262 = vand.u32 %v292, 4294901760
        %1263 = vmatmul.f32.gmra.mxu0 %v1262
        %v1264 = vpop.f32.mrf.mxu0
        %v1265 = vadd.f32 %v1060, %v1264
        %v1266 = vand.u32 %v295, 4294901760
        %1267 = vmatmul.f32.gmra.mxu0 %v1266
        %v1268 = vpop.f32.mrf.mxu0
        %v1269 = vadd.f32 %v1066, %v1268
        %v1270 = vand.u32 %v298, 4294901760
        %1271 = vmatmul.f32.gmra.mxu0 %v1270
        %v1272 = vpop.f32.mrf.mxu0
        %v1273 = vadd.f32 %v1072, %v1272
        %v1274 = vand.u32 %v301, 4294901760
        %1275 = vmatmul.f32.gmra.mxu0 %v1274
        %v1276 = vpop.f32.mrf.mxu0
        %v1277 = vadd.f32 %v1078, %v1276
        %v1278 = vand.u32 %v304, 4294901760
        %1279 = vmatmul.f32.gmra.mxu0 %v1278
        %v1280 = vpop.f32.mrf.mxu0
        %v1281 = vadd.f32 %v1084, %v1280
        %v1282 = vand.u32 %v307, 4294901760
        %1283 = vmatmul.f32.gmra.mxu0 %v1282
        %v1284 = vpop.f32.mrf.mxu0
        %v1285 = vadd.f32 %v1090, %v1284
        %v1286 = vand.u32 %v310, 4294901760
        %1287 = vmatmul.f32.gmra.mxu0 %v1286
        %v1288 = vpop.f32.mrf.mxu0
        %v1289 = vadd.f32 %v1096, %v1288
        %v1290 = vand.u32 %v313, 4294901760
        %1291 = vmatmul.f32.gmra.mxu0 %v1290
        %v1292 = vpop.f32.mrf.mxu0
        %v1293 = vadd.f32 %v1102, %v1292
        %v1294 = vand.u32 %v316, 4294901760
        %1295 = vmatmul.f32.gmra.mxu0 %v1294
        %v1296 = vpop.f32.mrf.mxu0
        %v1297 = vadd.f32 %v1108, %v1296
        %v1298 = vand.u32 %v319, 4294901760
        %1299 = vmatmul.f32.gmra.mxu0 %v1298
        %v1300 = vpop.f32.mrf.mxu0
        %v1301 = vadd.f32 %v1114, %v1300
        %v1302 = vand.u32 %v322, 4294901760
        %1303 = vmatmul.f32.gmra.mxu0 %v1302
        %v1304 = vpop.f32.mrf.mxu0
        %v1305 = vadd.f32 %v1120, %v1304
        %v1306 = vand.u32 %v325, 4294901760
        %1307 = vmatmul.f32.gmra.mxu0 %v1306
        %v1308 = vpop.f32.mrf.mxu0
        %v1309 = vadd.f32 %v1126, %v1308
        %v1310 = vand.u32 %v328, 4294901760
        %1311 = vmatmul.f32.gmra.mxu0 %v1310
        %v1312 = vpop.f32.mrf.mxu0
        %v1313 = vadd.f32 %v1132, %v1312
        %v1314 = vand.u32 %v331, 4294901760
        %1315 = vmatmul.f32.gmra.mxu0 %v1314
        %v1316 = vpop.f32.mrf.mxu0
        %v1317 = vadd.f32 %v1138, %v1316
        %v1318 = vand.u32 %v334, 4294901760
        %1319 = vmatmul.f32.gmra.mxu0 %v1318
        %v1320 = vpop.f32.mrf.mxu0
        %v1321 = vadd.f32 %v1144, %v1320
        %v1322 = vand.u32 %v337, 4294901760
        %1323 = vmatmul.f32.gmra.mxu0 %v1322
        %v1324 = vpop.f32.mrf.mxu0
        %v1325 = vadd.f32 %v1150, %v1324
        %v1326 = vand.u32 %v340, 4294901760
        %1327 = vmatmul.f32.gmra.mxu0 %v1326
        %v1328 = vpop.f32.mrf.mxu0
        %v1329 = vadd.f32 %v1156, %v1328
        %v1330 = vand.u32 %v343, 4294901760
        %1331 = vmatmul.f32.gmra.mxu0 %v1330
        %v1332 = vpop.f32.mrf.mxu0
        %v1333 = vadd.f32 %v1162, %v1332
        %v1334 = vand.u32 %v346, 4294901760
        %1335 = vmatmul.f32.gmra.mxu0 %v1334
        %v1336 = vpop.f32.mrf.mxu0
        %v1337 = vadd.f32 %v1168, %v1336
        %v1338 = vand.u32 %v349, 4294901760
        %1339 = vmatmul.f32.gmra.mxu0 %v1338
        %v1340 = vpop.f32.mrf.mxu0
        %v1341 = vadd.f32 %v1174, %v1340
        %v1342 = vand.u32 %v352, 4294901760
        %1343 = vmatmul.f32.gmra.mxu0 %v1342
        %v1344 = vpop.f32.mrf.mxu0
        %v1345 = vadd.f32 %v1180, %v1344
        %v1346 = vand.u32 %v355, 4294901760
        %1347 = vmatmul.f32.gmra.mxu0 %v1346
        %v1348 = vpop.f32.mrf.mxu0
        %v1349 = vadd.f32 %v1186, %v1348
        %v1350 = vand.u32 %v358, 4294901760
        %1351 = vmatmul.f32.gmra.mxu0 %v1350
        %v1352 = vpop.f32.mrf.mxu0
        %v1353 = vadd.f32 %v1192, %v1352
        %v1354 = vand.u32 %v361, 4294901760
        %1355 = vmatmul.f32.gmra.mxu0 %v1354
        %v1356 = vpop.f32.mrf.mxu0
        %v1357 = vadd.f32 %v1198, %v1356
        %v1358 = vand.u32 %v364, 4294901760
        %1359 = vmatmul.f32.gmra.mxu0 %v1358
        %v1360 = vpop.f32.mrf.mxu0
        %v1361 = vadd.f32 %v1204, %v1360
        %1362 = vdwg.mxu0
        %1363 = vmatpush.msra.mxu0 0.0
        %1364 = vmatpush.msra.mxu0 0.0
        %1365 = vmatpush.msra.mxu0 0.0
        %1366 = vmatpush.msra.mxu0 0.0
        %1367 = vmatpush.msra.mxu0 0.0
        %1368 = vmatpush.msra.mxu0 0.0
        %1369 = vmatpush.msra.mxu0 0.0
        %1370 = vmatpush.msra.mxu0 0.0
        %1371 = vmatpush.msra.mxu0 0.0
        %1372 = vmatpush.msra.mxu0 0.0
        %1373 = vmatpush.msra.mxu0 0.0
        %1374 = vmatpush.msra.mxu0 0.0
        %v1375 = vand.u32 %v230, 4294901760
        %1376 = vmatpush.msra.mxu0 %v1375
        %v1377 = vand.u32 %v229, 4294901760
        %1378 = vmatpush.msra.mxu0 %v1377
        %v1379 = vand.u32 %v228, 4294901760
        %1380 = vmatpush.msra.mxu0 %v1379
        %v1381 = vand.u32 %v227, 4294901760
        %1382 = vmatpush.msra.mxu0 %v1381
        %v1383 = vand.u32 %v271, 4294901760
        %1384 = vmatmul.f32.gmra.mxu0 %v1383
        %v1385 = vpop.f32.mrf.mxu0
        %v1386 = vadd.f32 %v1237, %v1385
        %v1387 = vand.u32 %v274, 4294901760
        %1388 = vmatmul.f32.gmra.mxu0 %v1387
        %v1389 = vpop.f32.mrf.mxu0
        %v1390 = vadd.f32 %v1241, %v1389
        %v1391 = vand.u32 %v277, 4294901760
        %1392 = vmatmul.f32.gmra.mxu0 %v1391
        %v1393 = vpop.f32.mrf.mxu0
        %v1394 = vadd.f32 %v1245, %v1393
        %v1395 = vand.u32 %v280, 4294901760
        %1396 = vmatmul.f32.gmra.mxu0 %v1395
        %v1397 = vpop.f32.mrf.mxu0
        %v1398 = vadd.f32 %v1249, %v1397
        %v1399 = vand.u32 %v283, 4294901760
        %1400 = vmatmul.f32.gmra.mxu0 %v1399
        %v1401 = vpop.f32.mrf.mxu0
        %v1402 = vadd.f32 %v1253, %v1401
        %v1403 = vand.u32 %v286, 4294901760
        %1404 = vmatmul.f32.gmra.mxu0 %v1403
        %v1405 = vpop.f32.mrf.mxu0
        %v1406 = vadd.f32 %v1257, %v1405
        %v1407 = vand.u32 %v289, 4294901760
        %1408 = vmatmul.f32.gmra.mxu0 %v1407
        %v1409 = vpop.f32.mrf.mxu0
        %v1410 = vadd.f32 %v1261, %v1409
        %v1411 = vand.u32 %v292, 4294901760
        %1412 = vmatmul.f32.gmra.mxu0 %v1411
        %v1413 = vpop.f32.mrf.mxu0
        %v1414 = vadd.f32 %v1265, %v1413
        %v1415 = vand.u32 %v295, 4294901760
        %1416 = vmatmul.f32.gmra.mxu0 %v1415
        %v1417 = vpop.f32.mrf.mxu0
        %v1418 = vadd.f32 %v1269, %v1417
        %v1419 = vand.u32 %v298, 4294901760
        %1420 = vmatmul.f32.gmra.mxu0 %v1419
        %v1421 = vpop.f32.mrf.mxu0
        %v1422 = vadd.f32 %v1273, %v1421
        %v1423 = vand.u32 %v301, 4294901760
        %1424 = vmatmul.f32.gmra.mxu0 %v1423
        %v1425 = vpop.f32.mrf.mxu0
        %v1426 = vadd.f32 %v1277, %v1425
        %v1427 = vand.u32 %v304, 4294901760
        %1428 = vmatmul.f32.gmra.mxu0 %v1427
        %v1429 = vpop.f32.mrf.mxu0
        %v1430 = vadd.f32 %v1281, %v1429
        %v1431 = vand.u32 %v307, 4294901760
        %1432 = vmatmul.f32.gmra.mxu0 %v1431
        %v1433 = vpop.f32.mrf.mxu0
        %v1434 = vadd.f32 %v1285, %v1433
        %v1435 = vand.u32 %v310, 4294901760
        %1436 = vmatmul.f32.gmra.mxu0 %v1435
        %v1437 = vpop.f32.mrf.mxu0
        %v1438 = vadd.f32 %v1289, %v1437
        %v1439 = vand.u32 %v313, 4294901760
        %1440 = vmatmul.f32.gmra.mxu0 %v1439
        %v1441 = vpop.f32.mrf.mxu0
        %v1442 = vadd.f32 %v1293, %v1441
        %v1443 = vand.u32 %v316, 4294901760
        %1444 = vmatmul.f32.gmra.mxu0 %v1443
        %v1445 = vpop.f32.mrf.mxu0
        %v1446 = vadd.f32 %v1297, %v1445
        %v1447 = vand.u32 %v319, 4294901760
        %1448 = vmatmul.f32.gmra.mxu0 %v1447
        %v1449 = vpop.f32.mrf.mxu0
        %v1450 = vadd.f32 %v1301, %v1449
        %v1451 = vand.u32 %v322, 4294901760
        %1452 = vmatmul.f32.gmra.mxu0 %v1451
        %v1453 = vpop.f32.mrf.mxu0
        %v1454 = vadd.f32 %v1305, %v1453
        %v1455 = vand.u32 %v325, 4294901760
        %1456 = vmatmul.f32.gmra.mxu0 %v1455
        %v1457 = vpop.f32.mrf.mxu0
        %v1458 = vadd.f32 %v1309, %v1457
        %v1459 = vand.u32 %v328, 4294901760
        %1460 = vmatmul.f32.gmra.mxu0 %v1459
        %v1461 = vpop.f32.mrf.mxu0
        %v1462 = vadd.f32 %v1313, %v1461
        %v1463 = vand.u32 %v331, 4294901760
        %1464 = vmatmul.f32.gmra.mxu0 %v1463
        %v1465 = vpop.f32.mrf.mxu0
        %v1466 = vadd.f32 %v1317, %v1465
        %v1467 = vand.u32 %v334, 4294901760
        %1468 = vmatmul.f32.gmra.mxu0 %v1467
        %v1469 = vpop.f32.mrf.mxu0
        %v1470 = vadd.f32 %v1321, %v1469
        %v1471 = vand.u32 %v337, 4294901760
        %1472 = vmatmul.f32.gmra.mxu0 %v1471
        %v1473 = vpop.f32.mrf.mxu0
        %v1474 = vadd.f32 %v1325, %v1473
        %v1475 = vand.u32 %v340, 4294901760
        %1476 = vmatmul.f32.gmra.mxu0 %v1475
        %v1477 = vpop.f32.mrf.mxu0
        %v1478 = vadd.f32 %v1329, %v1477
        %v1479 = vand.u32 %v343, 4294901760
        %1480 = vmatmul.f32.gmra.mxu0 %v1479
        %v1481 = vpop.f32.mrf.mxu0
        %v1482 = vadd.f32 %v1333, %v1481
        %v1483 = vand.u32 %v346, 4294901760
        %1484 = vmatmul.f32.gmra.mxu0 %v1483
        %v1485 = vpop.f32.mrf.mxu0
        %v1486 = vadd.f32 %v1337, %v1485
        %v1487 = vand.u32 %v349, 4294901760
        %1488 = vmatmul.f32.gmra.mxu0 %v1487
        %v1489 = vpop.f32.mrf.mxu0
        %v1490 = vadd.f32 %v1341, %v1489
        %v1491 = vand.u32 %v352, 4294901760
        %1492 = vmatmul.f32.gmra.mxu0 %v1491
        %v1493 = vpop.f32.mrf.mxu0
        %v1494 = vadd.f32 %v1345, %v1493
        %v1495 = vand.u32 %v355, 4294901760
        %1496 = vmatmul.f32.gmra.mxu0 %v1495
        %v1497 = vpop.f32.mrf.mxu0
        %v1498 = vadd.f32 %v1349, %v1497
        %v1499 = vand.u32 %v358, 4294901760
        %1500 = vmatmul.f32.gmra.mxu0 %v1499
        %v1501 = vpop.f32.mrf.mxu0
        %v1502 = vadd.f32 %v1353, %v1501
        %v1503 = vand.u32 %v361, 4294901760
        %1504 = vmatmul.f32.gmra.mxu0 %v1503
        %v1505 = vpop.f32.mrf.mxu0
        %v1506 = vadd.f32 %v1357, %v1505
        %v1507 = vand.u32 %v364, 4294901760
        %1508 = vmatmul.f32.gmra.mxu0 %v1507
        %v1509 = vpop.f32.mrf.mxu0
        %v1510 = vadd.f32 %v1361, %v1509
        %1511 = vdwg.mxu0
        %v1512 = vmax.f32 %v1386, 0.0
        %v1513 = vmax.f32 %v1390, 0.0
        %v1514 = vmax.f32 %v1394, 0.0
        %v1515 = vmax.f32 %v1398, 0.0
        %v1516 = vmax.f32 %v1402, 0.0
        %v1517 = vmax.f32 %v1406, 0.0
        %v1518 = vmax.f32 %v1410, 0.0
        %v1519 = vmax.f32 %v1414, 0.0
        %v1520 = vmax.f32 %v1418, 0.0
        %v1521 = vmax.f32 %v1422, 0.0
        %v1522 = vmax.f32 %v1426, 0.0
        %v1523 = vmax.f32 %v1430, 0.0
        %v1524 = vmax.f32 %v1434, 0.0
        %v1525 = vmax.f32 %v1438, 0.0
        %v1526 = vmax.f32 %v1442, 0.0
        %v1527 = vmax.f32 %v1446, 0.0
        %v1528 = vmax.f32 %v1450, 0.0
        %v1529 = vmax.f32 %v1454, 0.0
        %v1530 = vmax.f32 %v1458, 0.0
        %v1531 = vmax.f32 %v1462, 0.0
        %v1532 = vmax.f32 %v1466, 0.0
        %v1533 = vmax.f32 %v1470, 0.0
        %v1534 = vmax.f32 %v1474, 0.0
        %v1535 = vmax.f32 %v1478, 0.0
        %v1536 = vmax.f32 %v1482, 0.0
        %v1537 = vmax.f32 %v1486, 0.0
        %v1538 = vmax.f32 %v1490, 0.0
        %v1539 = vmax.f32 %v1494, 0.0
        %v1540 = vmax.f32 %v1498, 0.0
        %v1541 = vmax.f32 %v1502, 0.0
        %v1542 = vmax.f32 %v1506, 0.0
        %v1543 = vmax.f32 %v1510, 0.0
        %v1544 = vstv %s233
        %vm1545 = vcmask 523264
        %v1547 = vsel %vm1545, %v232, 0
        %v1550 = vsel %vm1545, %v1512, 0
        %v1553 = vsel %vm1545, %v1513, 0
        %v1556 = vsel %vm1545, %v1514, 0
        %v1559 = vsel %vm1545, %v1515, 0
        %v1562 = vsel %vm1545, %v1516, 0
        %v1565 = vsel %vm1545, %v1517, 0
        %v1568 = vsel %vm1545, %v1518, 0
        %v1571 = vsel %vm1545, %v1519, 0
        %v1574 = vsel %vm1545, %v1520, 0
        %v1577 = vsel %vm1545, %v1521, 0
        %v1580 = vsel %vm1545, %v1522, 0
        %v1583 = vsel %vm1545, %v1523, 0
        %v1586 = vsel %vm1545, %v1524, 0
        %v1589 = vsel %vm1545, %v1525, 0
        %v1592 = vsel %vm1545, %v1526, 0
        %v1595 = vsel %vm1545, %v1527, 0
        %v1598 = vsel %vm1545, %v1528, 0
        %v1601 = vsel %vm1545, %v1529, 0
        %v1604 = vsel %vm1545, %v1530, 0
        %v1607 = vsel %vm1545, %v1531, 0
        %v1610 = vsel %vm1545, %v1532, 0
        %v1613 = vsel %vm1545, %v1533, 0
        %v1616 = vsel %vm1545, %v1534, 0
        %v1619 = vsel %vm1545, %v1535, 0
        %v1622 = vsel %vm1545, %v1536, 0
        %v1625 = vsel %vm1545, %v1537, 0
        %v1628 = vsel %vm1545, %v1538, 0
        %v1631 = vsel %vm1545, %v1539, 0
        %v1634 = vsel %vm1545, %v1540, 0
        %v1637 = vsel %vm1545, %v1541, 0
        %v1640 = vsel %vm1545, %v1542, 0
        %v1643 = vsel %vm1545, %v1543, 0
        %v1645 = vand.u32 %v1595, 4294901760
        %1646 = vmatpush.xpose.msra.mxu0 %v1645
        %v1647 = vand.u32 %v1592, 4294901760
        %1648 = vmatpush.xpose.msra.mxu0 %v1647
        %v1649 = vand.u32 %v1589, 4294901760
        %1650 = vmatpush.xpose.msra.mxu0 %v1649
        %v1651 = vand.u32 %v1586, 4294901760
        %1652 = vmatpush.xpose.msra.mxu0 %v1651
        %v1653 = vand.u32 %v1583, 4294901760
        %1654 = vmatpush.xpose.msra.mxu0 %v1653
        %v1655 = vand.u32 %v1580, 4294901760
        %1656 = vmatpush.xpose.msra.mxu0 %v1655
        %v1657 = vand.u32 %v1577, 4294901760
        %1658 = vmatpush.xpose.msra.mxu0 %v1657
        %v1659 = vand.u32 %v1574, 4294901760
        %1660 = vmatpush.xpose.msra.mxu0 %v1659
        %v1661 = vand.u32 %v1571, 4294901760
        %1662 = vmatpush.xpose.msra.mxu0 %v1661
        %v1663 = vand.u32 %v1568, 4294901760
        %1664 = vmatpush.xpose.msra.mxu0 %v1663
        %v1665 = vand.u32 %v1565, 4294901760
        %1666 = vmatpush.xpose.msra.mxu0 %v1665
        %v1667 = vand.u32 %v1562, 4294901760
        %1668 = vmatpush.xpose.msra.mxu0 %v1667
        %v1669 = vand.u32 %v1559, 4294901760
        %1670 = vmatpush.xpose.msra.mxu0 %v1669
        %v1671 = vand.u32 %v1556, 4294901760
        %1672 = vmatpush.xpose.msra.mxu0 %v1671
        %v1673 = vand.u32 %v1553, 4294901760
        %1674 = vmatpush.xpose.msra.mxu0 %v1673
        %v1675 = vand.u32 %v1550, 4294901760
        %1676 = vmatpush.xpose.msra.mxu0 %v1675
        %v1677 = vand.u32 %v1547, 4294901760
        %v1678 = vsub.f32 %v1547, %v1677
        %v1679 = vand.u32 %v1678, 4294901760
        %v1680 = vsub.f32 %v1678, %v1679
        %v1681 = vand.u32 %v1680, 4294901760
        %1682 = vmatmul.f32.gmra.mxu0 %v1681
        %v1683 = vpop.f32.mrf.mxu0
        %v1684 = vadd.f32 %v1544, %v1683
        %1685 = vdwg.mxu0
        %v1686 = vand.u32 %v1595, 4294901760
        %v1687 = vsub.f32 %v1595, %v1686
        %v1688 = vand.u32 %v1687, 4294901760
        %v1689 = vsub.f32 %v1687, %v1688
        %v1690 = vand.u32 %v1689, 4294901760
        %1691 = vmatpush.xpose.msra.mxu0 %v1690
        %v1692 = vand.u32 %v1592, 4294901760
        %v1693 = vsub.f32 %v1592, %v1692
        %v1694 = vand.u32 %v1693, 4294901760
        %v1695 = vsub.f32 %v1693, %v1694
        %v1696 = vand.u32 %v1695, 4294901760
        %1697 = vmatpush.xpose.msra.mxu0 %v1696
        %v1698 = vand.u32 %v1589, 4294901760
        %v1699 = vsub.f32 %v1589, %v1698
        %v1700 = vand.u32 %v1699, 4294901760
        %v1701 = vsub.f32 %v1699, %v1700
        %v1702 = vand.u32 %v1701, 4294901760
        %1703 = vmatpush.xpose.msra.mxu0 %v1702
        %v1704 = vand.u32 %v1586, 4294901760
        %v1705 = vsub.f32 %v1586, %v1704
        %v1706 = vand.u32 %v1705, 4294901760
        %v1707 = vsub.f32 %v1705, %v1706
        %v1708 = vand.u32 %v1707, 4294901760
        %1709 = vmatpush.xpose.msra.mxu0 %v1708
        %v1710 = vand.u32 %v1583, 4294901760
        %v1711 = vsub.f32 %v1583, %v1710
        %v1712 = vand.u32 %v1711, 4294901760
        %v1713 = vsub.f32 %v1711, %v1712
        %v1714 = vand.u32 %v1713, 4294901760
        %1715 = vmatpush.xpose.msra.mxu0 %v1714
        %v1716 = vand.u32 %v1580, 4294901760
        %v1717 = vsub.f32 %v1580, %v1716
        %v1718 = vand.u32 %v1717, 4294901760
        %v1719 = vsub.f32 %v1717, %v1718
        %v1720 = vand.u32 %v1719, 4294901760
        %1721 = vmatpush.xpose.msra.mxu0 %v1720
        %v1722 = vand.u32 %v1577, 4294901760
        %v1723 = vsub.f32 %v1577, %v1722
        %v1724 = vand.u32 %v1723, 4294901760
        %v1725 = vsub.f32 %v1723, %v1724
        %v1726 = vand.u32 %v1725, 4294901760
        %1727 = vmatpush.xpose.msra.mxu0 %v1726
        %v1728 = vand.u32 %v1574, 4294901760
        %v1729 = vsub.f32 %v1574, %v1728
        %v1730 = vand.u32 %v1729, 4294901760
        %v1731 = vsub.f32 %v1729, %v1730
        %v1732 = vand.u32 %v1731, 4294901760
        %1733 = vmatpush.xpose.msra.mxu0 %v1732
        %v1734 = vand.u32 %v1571, 4294901760
        %v1735 = vsub.f32 %v1571, %v1734
        %v1736 = vand.u32 %v1735, 4294901760
        %v1737 = vsub.f32 %v1735, %v1736
        %v1738 = vand.u32 %v1737, 4294901760
        %1739 = vmatpush.xpose.msra.mxu0 %v1738
        %v1740 = vand.u32 %v1568, 4294901760
        %v1741 = vsub.f32 %v1568, %v1740
        %v1742 = vand.u32 %v1741, 4294901760
        %v1743 = vsub.f32 %v1741, %v1742
        %v1744 = vand.u32 %v1743, 4294901760
        %1745 = vmatpush.xpose.msra.mxu0 %v1744
        %v1746 = vand.u32 %v1565, 4294901760
        %v1747 = vsub.f32 %v1565, %v1746
        %v1748 = vand.u32 %v1747, 4294901760
        %v1749 = vsub.f32 %v1747, %v1748
        %v1750 = vand.u32 %v1749, 4294901760
        %1751 = vmatpush.xpose.msra.mxu0 %v1750
        %v1752 = vand.u32 %v1562, 4294901760
        %v1753 = vsub.f32 %v1562, %v1752
        %v1754 = vand.u32 %v1753, 4294901760
        %v1755 = vsub.f32 %v1753, %v1754
        %v1756 = vand.u32 %v1755, 4294901760
        %1757 = vmatpush.xpose.msra.mxu0 %v1756
        %v1758 = vand.u32 %v1559, 4294901760
        %v1759 = vsub.f32 %v1559, %v1758
        %v1760 = vand.u32 %v1759, 4294901760
        %v1761 = vsub.f32 %v1759, %v1760
        %v1762 = vand.u32 %v1761, 4294901760
        %1763 = vmatpush.xpose.msra.mxu0 %v1762
        %v1764 = vand.u32 %v1556, 4294901760
        %v1765 = vsub.f32 %v1556, %v1764
        %v1766 = vand.u32 %v1765, 4294901760
        %v1767 = vsub.f32 %v1765, %v1766
        %v1768 = vand.u32 %v1767, 4294901760
        %1769 = vmatpush.xpose.msra.mxu0 %v1768
        %v1770 = vand.u32 %v1553, 4294901760
        %v1771 = vsub.f32 %v1553, %v1770
        %v1772 = vand.u32 %v1771, 4294901760
        %v1773 = vsub.f32 %v1771, %v1772
        %v1774 = vand.u32 %v1773, 4294901760
        %1775 = vmatpush.xpose.msra.mxu0 %v1774
        %v1776 = vand.u32 %v1550, 4294901760
        %v1777 = vsub.f32 %v1550, %v1776
        %v1778 = vand.u32 %v1777, 4294901760
        %v1779 = vsub.f32 %v1777, %v1778
        %v1780 = vand.u32 %v1779, 4294901760
        %1781 = vmatpush.xpose.msra.mxu0 %v1780
        %v1782 = vand.u32 %v1547, 4294901760
        %1783 = vmatmul.f32.gmra.mxu0 %v1782
        %v1784 = vpop.f32.mrf.mxu0
        %v1785 = vadd.f32 %v1684, %v1784
        %1786 = vdwg.mxu0
        %v1787 = vand.u32 %v1595, 4294901760
        %v1788 = vsub.f32 %v1595, %v1787
        %1789 = vmatpush.xpose.msra.mxu0 %v1788
        %v1790 = vand.u32 %v1592, 4294901760
        %v1791 = vsub.f32 %v1592, %v1790
        %1792 = vmatpush.xpose.msra.mxu0 %v1791
        %v1793 = vand.u32 %v1589, 4294901760
        %v1794 = vsub.f32 %v1589, %v1793
        %1795 = vmatpush.xpose.msra.mxu0 %v1794
        %v1796 = vand.u32 %v1586, 4294901760
        %v1797 = vsub.f32 %v1586, %v1796
        %1798 = vmatpush.xpose.msra.mxu0 %v1797
        %v1799 = vand.u32 %v1583, 4294901760
        %v1800 = vsub.f32 %v1583, %v1799
        %1801 = vmatpush.xpose.msra.mxu0 %v1800
        %v1802 = vand.u32 %v1580, 4294901760
        %v1803 = vsub.f32 %v1580, %v1802
        %1804 = vmatpush.xpose.msra.mxu0 %v1803
        %v1805 = vand.u32 %v1577, 4294901760
        %v1806 = vsub.f32 %v1577, %v1805
        %1807 = vmatpush.xpose.msra.mxu0 %v1806
        %v1808 = vand.u32 %v1574, 4294901760
        %v1809 = vsub.f32 %v1574, %v1808
        %1810 = vmatpush.xpose.msra.mxu0 %v1809
        %v1811 = vand.u32 %v1571, 4294901760
        %v1812 = vsub.f32 %v1571, %v1811
        %1813 = vmatpush.xpose.msra.mxu0 %v1812
        %v1814 = vand.u32 %v1568, 4294901760
        %v1815 = vsub.f32 %v1568, %v1814
        %1816 = vmatpush.xpose.msra.mxu0 %v1815
        %v1817 = vand.u32 %v1565, 4294901760
        %v1818 = vsub.f32 %v1565, %v1817
        %1819 = vmatpush.xpose.msra.mxu0 %v1818
        %v1820 = vand.u32 %v1562, 4294901760
        %v1821 = vsub.f32 %v1562, %v1820
        %1822 = vmatpush.xpose.msra.mxu0 %v1821
        %v1823 = vand.u32 %v1559, 4294901760
        %v1824 = vsub.f32 %v1559, %v1823
        %1825 = vmatpush.xpose.msra.mxu0 %v1824
        %v1826 = vand.u32 %v1556, 4294901760
        %v1827 = vsub.f32 %v1556, %v1826
        %1828 = vmatpush.xpose.msra.mxu0 %v1827
        %v1829 = vand.u32 %v1553, 4294901760
        %v1830 = vsub.f32 %v1553, %v1829
        %1831 = vmatpush.xpose.msra.mxu0 %v1830
        %v1832 = vand.u32 %v1550, 4294901760
        %v1833 = vsub.f32 %v1550, %v1832
        %1834 = vmatpush.xpose.msra.mxu0 %v1833
        %v1835 = vand.u32 %v1547, 4294901760
        %v1836 = vsub.f32 %v1547, %v1835
        %1837 = vmatmul.f32.gmra.mxu0 %v1836
        %v1838 = vpop.f32.mrf.mxu0
        %v1839 = vadd.f32 %v1785, %v1838
        %1840 = vdwg.mxu0
        %v1841 = vand.u32 %v1595, 4294901760
        %1842 = vmatpush.xpose.msra.mxu0 %v1841
        %v1843 = vand.u32 %v1592, 4294901760
        %1844 = vmatpush.xpose.msra.mxu0 %v1843
        %v1845 = vand.u32 %v1589, 4294901760
        %1846 = vmatpush.xpose.msra.mxu0 %v1845
        %v1847 = vand.u32 %v1586, 4294901760
        %1848 = vmatpush.xpose.msra.mxu0 %v1847
        %v1849 = vand.u32 %v1583, 4294901760
        %1850 = vmatpush.xpose.msra.mxu0 %v1849
        %v1851 = vand.u32 %v1580, 4294901760
        %1852 = vmatpush.xpose.msra.mxu0 %v1851
        %v1853 = vand.u32 %v1577, 4294901760
        %1854 = vmatpush.xpose.msra.mxu0 %v1853
        %v1855 = vand.u32 %v1574, 4294901760
        %1856 = vmatpush.xpose.msra.mxu0 %v1855
        %v1857 = vand.u32 %v1571, 4294901760
        %1858 = vmatpush.xpose.msra.mxu0 %v1857
        %v1859 = vand.u32 %v1568, 4294901760
        %1860 = vmatpush.xpose.msra.mxu0 %v1859
        %v1861 = vand.u32 %v1565, 4294901760
        %1862 = vmatpush.xpose.msra.mxu0 %v1861
        %v1863 = vand.u32 %v1562, 4294901760
        %1864 = vmatpush.xpose.msra.mxu0 %v1863
        %v1865 = vand.u32 %v1559, 4294901760
        %1866 = vmatpush.xpose.msra.mxu0 %v1865
        %v1867 = vand.u32 %v1556, 4294901760
        %1868 = vmatpush.xpose.msra.mxu0 %v1867
        %v1869 = vand.u32 %v1553, 4294901760
        %1870 = vmatpush.xpose.msra.mxu0 %v1869
        %v1871 = vand.u32 %v1550, 4294901760
        %1872 = vmatpush.xpose.msra.mxu0 %v1871
        %v1873 = vand.u32 %v1547, 4294901760
        %v1874 = vsub.f32 %v1547, %v1873
        %v1875 = vand.u32 %v1874, 4294901760
        %1876 = vmatmul.f32.gmra.mxu0 %v1875
        %v1877 = vpop.f32.mrf.mxu0
        %v1878 = vadd.f32 %v1839, %v1877
        %1879 = vdwg.mxu0
        %v1880 = vand.u32 %v1595, 4294901760
        %v1881 = vsub.f32 %v1595, %v1880
        %v1882 = vand.u32 %v1881, 4294901760
        %1883 = vmatpush.xpose.msra.mxu0 %v1882
        %v1884 = vand.u32 %v1592, 4294901760
        %v1885 = vsub.f32 %v1592, %v1884
        %v1886 = vand.u32 %v1885, 4294901760
        %1887 = vmatpush.xpose.msra.mxu0 %v1886
        %v1888 = vand.u32 %v1589, 4294901760
        %v1889 = vsub.f32 %v1589, %v1888
        %v1890 = vand.u32 %v1889, 4294901760
        %1891 = vmatpush.xpose.msra.mxu0 %v1890
        %v1892 = vand.u32 %v1586, 4294901760
        %v1893 = vsub.f32 %v1586, %v1892
        %v1894 = vand.u32 %v1893, 4294901760
        %1895 = vmatpush.xpose.msra.mxu0 %v1894
        %v1896 = vand.u32 %v1583, 4294901760
        %v1897 = vsub.f32 %v1583, %v1896
        %v1898 = vand.u32 %v1897, 4294901760
        %1899 = vmatpush.xpose.msra.mxu0 %v1898
        %v1900 = vand.u32 %v1580, 4294901760
        %v1901 = vsub.f32 %v1580, %v1900
        %v1902 = vand.u32 %v1901, 4294901760
        %1903 = vmatpush.xpose.msra.mxu0 %v1902
        %v1904 = vand.u32 %v1577, 4294901760
        %v1905 = vsub.f32 %v1577, %v1904
        %v1906 = vand.u32 %v1905, 4294901760
        %1907 = vmatpush.xpose.msra.mxu0 %v1906
        %v1908 = vand.u32 %v1574, 4294901760
        %v1909 = vsub.f32 %v1574, %v1908
        %v1910 = vand.u32 %v1909, 4294901760
        %1911 = vmatpush.xpose.msra.mxu0 %v1910
        %v1912 = vand.u32 %v1571, 4294901760
        %v1913 = vsub.f32 %v1571, %v1912
        %v1914 = vand.u32 %v1913, 4294901760
        %1915 = vmatpush.xpose.msra.mxu0 %v1914
        %v1916 = vand.u32 %v1568, 4294901760
        %v1917 = vsub.f32 %v1568, %v1916
        %v1918 = vand.u32 %v1917, 4294901760
        %1919 = vmatpush.xpose.msra.mxu0 %v1918
        %v1920 = vand.u32 %v1565, 4294901760
        %v1921 = vsub.f32 %v1565, %v1920
        %v1922 = vand.u32 %v1921, 4294901760
        %1923 = vmatpush.xpose.msra.mxu0 %v1922
        %v1924 = vand.u32 %v1562, 4294901760
        %v1925 = vsub.f32 %v1562, %v1924
        %v1926 = vand.u32 %v1925, 4294901760
        %1927 = vmatpush.xpose.msra.mxu0 %v1926
        %v1928 = vand.u32 %v1559, 4294901760
        %v1929 = vsub.f32 %v1559, %v1928
        %v1930 = vand.u32 %v1929, 4294901760
        %1931 = vmatpush.xpose.msra.mxu0 %v1930
        %v1932 = vand.u32 %v1556, 4294901760
        %v1933 = vsub.f32 %v1556, %v1932
        %v1934 = vand.u32 %v1933, 4294901760
        %1935 = vmatpush.xpose.msra.mxu0 %v1934
        %v1936 = vand.u32 %v1553, 4294901760
        %v1937 = vsub.f32 %v1553, %v1936
        %v1938 = vand.u32 %v1937, 4294901760
        %1939 = vmatpush.xpose.msra.mxu0 %v1938
        %v1940 = vand.u32 %v1550, 4294901760
        %v1941 = vsub.f32 %v1550, %v1940
        %v1942 = vand.u32 %v1941, 4294901760
        %1943 = vmatpush.xpose.msra.mxu0 %v1942
        %v1944 = vand.u32 %v1547, 4294901760
        %1945 = vmatmul.f32.gmra.mxu0 %v1944
        %v1946 = vpop.f32.mrf.mxu0
        %v1947 = vadd.f32 %v1878, %v1946
        %1948 = vdwg.mxu0
        %v1949 = vand.u32 %v1595, 4294901760
        %1950 = vmatpush.xpose.msra.mxu0 %v1949
        %v1951 = vand.u32 %v1592, 4294901760
        %1952 = vmatpush.xpose.msra.mxu0 %v1951
        %v1953 = vand.u32 %v1589, 4294901760
        %1954 = vmatpush.xpose.msra.mxu0 %v1953
        %v1955 = vand.u32 %v1586, 4294901760
        %1956 = vmatpush.xpose.msra.mxu0 %v1955
        %v1957 = vand.u32 %v1583, 4294901760
        %1958 = vmatpush.xpose.msra.mxu0 %v1957
        %v1959 = vand.u32 %v1580, 4294901760
        %1960 = vmatpush.xpose.msra.mxu0 %v1959
        %v1961 = vand.u32 %v1577, 4294901760
        %1962 = vmatpush.xpose.msra.mxu0 %v1961
        %v1963 = vand.u32 %v1574, 4294901760
        %1964 = vmatpush.xpose.msra.mxu0 %v1963
        %v1965 = vand.u32 %v1571, 4294901760
        %1966 = vmatpush.xpose.msra.mxu0 %v1965
        %v1967 = vand.u32 %v1568, 4294901760
        %1968 = vmatpush.xpose.msra.mxu0 %v1967
        %v1969 = vand.u32 %v1565, 4294901760
        %1970 = vmatpush.xpose.msra.mxu0 %v1969
        %v1971 = vand.u32 %v1562, 4294901760
        %1972 = vmatpush.xpose.msra.mxu0 %v1971
        %v1973 = vand.u32 %v1559, 4294901760
        %1974 = vmatpush.xpose.msra.mxu0 %v1973
        %v1975 = vand.u32 %v1556, 4294901760
        %1976 = vmatpush.xpose.msra.mxu0 %v1975
        %v1977 = vand.u32 %v1553, 4294901760
        %1978 = vmatpush.xpose.msra.mxu0 %v1977
        %v1979 = vand.u32 %v1550, 4294901760
        %1980 = vmatpush.xpose.msra.mxu0 %v1979
        %v1981 = vand.u32 %v1547, 4294901760
        %1982 = vmatmul.f32.gmra.mxu0 %v1981
        %v1983 = vpop.f32.mrf.mxu0
        %v1984 = vadd.f32 %v1947, %v1983
        %1985 = vdwg.mxu0
        %v1986 = vand.u32 %v1643, 4294901760
        %1987 = vmatpush.xpose.msra.mxu0 %v1986
        %v1988 = vand.u32 %v1640, 4294901760
        %1989 = vmatpush.xpose.msra.mxu0 %v1988
        %v1990 = vand.u32 %v1637, 4294901760
        %1991 = vmatpush.xpose.msra.mxu0 %v1990
        %v1992 = vand.u32 %v1634, 4294901760
        %1993 = vmatpush.xpose.msra.mxu0 %v1992
        %v1994 = vand.u32 %v1631, 4294901760
        %1995 = vmatpush.xpose.msra.mxu0 %v1994
        %v1996 = vand.u32 %v1628, 4294901760
        %1997 = vmatpush.xpose.msra.mxu0 %v1996
        %v1998 = vand.u32 %v1625, 4294901760
        %1999 = vmatpush.xpose.msra.mxu0 %v1998
        %v2000 = vand.u32 %v1622, 4294901760
        %2001 = vmatpush.xpose.msra.mxu0 %v2000
        %v2002 = vand.u32 %v1619, 4294901760
        %2003 = vmatpush.xpose.msra.mxu0 %v2002
        %v2004 = vand.u32 %v1616, 4294901760
        %2005 = vmatpush.xpose.msra.mxu0 %v2004
        %v2006 = vand.u32 %v1613, 4294901760
        %2007 = vmatpush.xpose.msra.mxu0 %v2006
        %v2008 = vand.u32 %v1610, 4294901760
        %2009 = vmatpush.xpose.msra.mxu0 %v2008
        %v2010 = vand.u32 %v1607, 4294901760
        %2011 = vmatpush.xpose.msra.mxu0 %v2010
        %v2012 = vand.u32 %v1604, 4294901760
        %2013 = vmatpush.xpose.msra.mxu0 %v2012
        %v2014 = vand.u32 %v1601, 4294901760
        %2015 = vmatpush.xpose.msra.mxu0 %v2014
        %v2016 = vand.u32 %v1598, 4294901760
        %2017 = vmatpush.xpose.msra.mxu0 %v2016
        %v2018 = vand.u32 %v1547, 4294901760
        %v2019 = vsub.f32 %v1547, %v2018
        %v2020 = vand.u32 %v2019, 4294901760
        %v2021 = vsub.f32 %v2019, %v2020
        %v2022 = vand.u32 %v2021, 4294901760
        %2023 = vmatmul.f32.gmra.mxu0 %v2022
        %v2024 = vpop.f32.mrf.mxu0
        %v2025 = vadd.f32 %v1544, %v2024
        %2026 = vdwg.mxu0
        %v2027 = vand.u32 %v1643, 4294901760
        %v2028 = vsub.f32 %v1643, %v2027
        %v2029 = vand.u32 %v2028, 4294901760
        %v2030 = vsub.f32 %v2028, %v2029
        %v2031 = vand.u32 %v2030, 4294901760
        %2032 = vmatpush.xpose.msra.mxu0 %v2031
        %v2033 = vand.u32 %v1640, 4294901760
        %v2034 = vsub.f32 %v1640, %v2033
        %v2035 = vand.u32 %v2034, 4294901760
        %v2036 = vsub.f32 %v2034, %v2035
        %v2037 = vand.u32 %v2036, 4294901760
        %2038 = vmatpush.xpose.msra.mxu0 %v2037
        %v2039 = vand.u32 %v1637, 4294901760
        %v2040 = vsub.f32 %v1637, %v2039
        %v2041 = vand.u32 %v2040, 4294901760
        %v2042 = vsub.f32 %v2040, %v2041
        %v2043 = vand.u32 %v2042, 4294901760
        %2044 = vmatpush.xpose.msra.mxu0 %v2043
        %v2045 = vand.u32 %v1634, 4294901760
        %v2046 = vsub.f32 %v1634, %v2045
        %v2047 = vand.u32 %v2046, 4294901760
        %v2048 = vsub.f32 %v2046, %v2047
        %v2049 = vand.u32 %v2048, 4294901760
        %2050 = vmatpush.xpose.msra.mxu0 %v2049
        %v2051 = vand.u32 %v1631, 4294901760
        %v2052 = vsub.f32 %v1631, %v2051
        %v2053 = vand.u32 %v2052, 4294901760
        %v2054 = vsub.f32 %v2052, %v2053
        %v2055 = vand.u32 %v2054, 4294901760
        %2056 = vmatpush.xpose.msra.mxu0 %v2055
        %v2057 = vand.u32 %v1628, 4294901760
        %v2058 = vsub.f32 %v1628, %v2057
        %v2059 = vand.u32 %v2058, 4294901760
        %v2060 = vsub.f32 %v2058, %v2059
        %v2061 = vand.u32 %v2060, 4294901760
        %2062 = vmatpush.xpose.msra.mxu0 %v2061
        %v2063 = vand.u32 %v1625, 4294901760
        %v2064 = vsub.f32 %v1625, %v2063
        %v2065 = vand.u32 %v2064, 4294901760
        %v2066 = vsub.f32 %v2064, %v2065
        %v2067 = vand.u32 %v2066, 4294901760
        %2068 = vmatpush.xpose.msra.mxu0 %v2067
        %v2069 = vand.u32 %v1622, 4294901760
        %v2070 = vsub.f32 %v1622, %v2069
        %v2071 = vand.u32 %v2070, 4294901760
        %v2072 = vsub.f32 %v2070, %v2071
        %v2073 = vand.u32 %v2072, 4294901760
        %2074 = vmatpush.xpose.msra.mxu0 %v2073
        %v2075 = vand.u32 %v1619, 4294901760
        %v2076 = vsub.f32 %v1619, %v2075
        %v2077 = vand.u32 %v2076, 4294901760
        %v2078 = vsub.f32 %v2076, %v2077
        %v2079 = vand.u32 %v2078, 4294901760
        %2080 = vmatpush.xpose.msra.mxu0 %v2079
        %v2081 = vand.u32 %v1616, 4294901760
        %v2082 = vsub.f32 %v1616, %v2081
        %v2083 = vand.u32 %v2082, 4294901760
        %v2084 = vsub.f32 %v2082, %v2083
        %v2085 = vand.u32 %v2084, 4294901760
        %2086 = vmatpush.xpose.msra.mxu0 %v2085
        %v2087 = vand.u32 %v1613, 4294901760
        %v2088 = vsub.f32 %v1613, %v2087
        %v2089 = vand.u32 %v2088, 4294901760
        %v2090 = vsub.f32 %v2088, %v2089
        %v2091 = vand.u32 %v2090, 4294901760
        %2092 = vmatpush.xpose.msra.mxu0 %v2091
        %v2093 = vand.u32 %v1610, 4294901760
        %v2094 = vsub.f32 %v1610, %v2093
        %v2095 = vand.u32 %v2094, 4294901760
        %v2096 = vsub.f32 %v2094, %v2095
        %v2097 = vand.u32 %v2096, 4294901760
        %2098 = vmatpush.xpose.msra.mxu0 %v2097
        %v2099 = vand.u32 %v1607, 4294901760
        %v2100 = vsub.f32 %v1607, %v2099
        %v2101 = vand.u32 %v2100, 4294901760
        %v2102 = vsub.f32 %v2100, %v2101
        %v2103 = vand.u32 %v2102, 4294901760
        %2104 = vmatpush.xpose.msra.mxu0 %v2103
        %v2105 = vand.u32 %v1604, 4294901760
        %v2106 = vsub.f32 %v1604, %v2105
        %v2107 = vand.u32 %v2106, 4294901760
        %v2108 = vsub.f32 %v2106, %v2107
        %v2109 = vand.u32 %v2108, 4294901760
        %2110 = vmatpush.xpose.msra.mxu0 %v2109
        %v2111 = vand.u32 %v1601, 4294901760
        %v2112 = vsub.f32 %v1601, %v2111
        %v2113 = vand.u32 %v2112, 4294901760
        %v2114 = vsub.f32 %v2112, %v2113
        %v2115 = vand.u32 %v2114, 4294901760
        %2116 = vmatpush.xpose.msra.mxu0 %v2115
        %v2117 = vand.u32 %v1598, 4294901760
        %v2118 = vsub.f32 %v1598, %v2117
        %v2119 = vand.u32 %v2118, 4294901760
        %v2120 = vsub.f32 %v2118, %v2119
        %v2121 = vand.u32 %v2120, 4294901760
        %2122 = vmatpush.xpose.msra.mxu0 %v2121
        %v2123 = vand.u32 %v1547, 4294901760
        %2124 = vmatmul.f32.gmra.mxu0 %v2123
        %v2125 = vpop.f32.mrf.mxu0
        %v2126 = vadd.f32 %v2025, %v2125
        %2127 = vdwg.mxu0
        %v2128 = vand.u32 %v1643, 4294901760
        %v2129 = vsub.f32 %v1643, %v2128
        %2130 = vmatpush.xpose.msra.mxu0 %v2129
        %v2131 = vand.u32 %v1640, 4294901760
        %v2132 = vsub.f32 %v1640, %v2131
        %2133 = vmatpush.xpose.msra.mxu0 %v2132
        %v2134 = vand.u32 %v1637, 4294901760
        %v2135 = vsub.f32 %v1637, %v2134
        %2136 = vmatpush.xpose.msra.mxu0 %v2135
        %v2137 = vand.u32 %v1634, 4294901760
        %v2138 = vsub.f32 %v1634, %v2137
        %2139 = vmatpush.xpose.msra.mxu0 %v2138
        %v2140 = vand.u32 %v1631, 4294901760
        %v2141 = vsub.f32 %v1631, %v2140
        %2142 = vmatpush.xpose.msra.mxu0 %v2141
        %v2143 = vand.u32 %v1628, 4294901760
        %v2144 = vsub.f32 %v1628, %v2143
        %2145 = vmatpush.xpose.msra.mxu0 %v2144
        %v2146 = vand.u32 %v1625, 4294901760
        %v2147 = vsub.f32 %v1625, %v2146
        %2148 = vmatpush.xpose.msra.mxu0 %v2147
        %v2149 = vand.u32 %v1622, 4294901760
        %v2150 = vsub.f32 %v1622, %v2149
        %2151 = vmatpush.xpose.msra.mxu0 %v2150
        %v2152 = vand.u32 %v1619, 4294901760
        %v2153 = vsub.f32 %v1619, %v2152
        %2154 = vmatpush.xpose.msra.mxu0 %v2153
        %v2155 = vand.u32 %v1616, 4294901760
        %v2156 = vsub.f32 %v1616, %v2155
        %2157 = vmatpush.xpose.msra.mxu0 %v2156
        %v2158 = vand.u32 %v1613, 4294901760
        %v2159 = vsub.f32 %v1613, %v2158
        %2160 = vmatpush.xpose.msra.mxu0 %v2159
        %v2161 = vand.u32 %v1610, 4294901760
        %v2162 = vsub.f32 %v1610, %v2161
        %2163 = vmatpush.xpose.msra.mxu0 %v2162
        %v2164 = vand.u32 %v1607, 4294901760
        %v2165 = vsub.f32 %v1607, %v2164
        %2166 = vmatpush.xpose.msra.mxu0 %v2165
        %v2167 = vand.u32 %v1604, 4294901760
        %v2168 = vsub.f32 %v1604, %v2167
        %2169 = vmatpush.xpose.msra.mxu0 %v2168
        %v2170 = vand.u32 %v1601, 4294901760
        %v2171 = vsub.f32 %v1601, %v2170
        %2172 = vmatpush.xpose.msra.mxu0 %v2171
        %v2173 = vand.u32 %v1598, 4294901760
        %v2174 = vsub.f32 %v1598, %v2173
        %2175 = vmatpush.xpose.msra.mxu0 %v2174
        %v2176 = vand.u32 %v1547, 4294901760
        %v2177 = vsub.f32 %v1547, %v2176
        %2178 = vmatmul.f32.gmra.mxu0 %v2177
        %v2179 = vpop.f32.mrf.mxu0
        %v2180 = vadd.f32 %v2126, %v2179
        %2181 = vdwg.mxu0
        %v2182 = vand.u32 %v1643, 4294901760
        %2183 = vmatpush.xpose.msra.mxu0 %v2182
        %v2184 = vand.u32 %v1640, 4294901760
        %2185 = vmatpush.xpose.msra.mxu0 %v2184
        %v2186 = vand.u32 %v1637, 4294901760
        %2187 = vmatpush.xpose.msra.mxu0 %v2186
        %v2188 = vand.u32 %v1634, 4294901760
        %2189 = vmatpush.xpose.msra.mxu0 %v2188
        %v2190 = vand.u32 %v1631, 4294901760
        %2191 = vmatpush.xpose.msra.mxu0 %v2190
        %v2192 = vand.u32 %v1628, 4294901760
        %2193 = vmatpush.xpose.msra.mxu0 %v2192
        %v2194 = vand.u32 %v1625, 4294901760
        %2195 = vmatpush.xpose.msra.mxu0 %v2194
        %v2196 = vand.u32 %v1622, 4294901760
        %2197 = vmatpush.xpose.msra.mxu0 %v2196
        %v2198 = vand.u32 %v1619, 4294901760
        %2199 = vmatpush.xpose.msra.mxu0 %v2198
        %v2200 = vand.u32 %v1616, 4294901760
        %2201 = vmatpush.xpose.msra.mxu0 %v2200
        %v2202 = vand.u32 %v1613, 4294901760
        %2203 = vmatpush.xpose.msra.mxu0 %v2202
        %v2204 = vand.u32 %v1610, 4294901760
        %2205 = vmatpush.xpose.msra.mxu0 %v2204
        %v2206 = vand.u32 %v1607, 4294901760
        %2207 = vmatpush.xpose.msra.mxu0 %v2206
        %v2208 = vand.u32 %v1604, 4294901760
        %2209 = vmatpush.xpose.msra.mxu0 %v2208
        %v2210 = vand.u32 %v1601, 4294901760
        %2211 = vmatpush.xpose.msra.mxu0 %v2210
        %v2212 = vand.u32 %v1598, 4294901760
        %2213 = vmatpush.xpose.msra.mxu0 %v2212
        %v2214 = vand.u32 %v1547, 4294901760
        %v2215 = vsub.f32 %v1547, %v2214
        %v2216 = vand.u32 %v2215, 4294901760
        %2217 = vmatmul.f32.gmra.mxu0 %v2216
        %v2218 = vpop.f32.mrf.mxu0
        %v2219 = vadd.f32 %v2180, %v2218
        %2220 = vdwg.mxu0
        %v2221 = vand.u32 %v1643, 4294901760
        %v2222 = vsub.f32 %v1643, %v2221
        %v2223 = vand.u32 %v2222, 4294901760
        %2224 = vmatpush.xpose.msra.mxu0 %v2223
        %v2225 = vand.u32 %v1640, 4294901760
        %v2226 = vsub.f32 %v1640, %v2225
        %v2227 = vand.u32 %v2226, 4294901760
        %2228 = vmatpush.xpose.msra.mxu0 %v2227
        %v2229 = vand.u32 %v1637, 4294901760
        %v2230 = vsub.f32 %v1637, %v2229
        %v2231 = vand.u32 %v2230, 4294901760
        %2232 = vmatpush.xpose.msra.mxu0 %v2231
        %v2233 = vand.u32 %v1634, 4294901760
        %v2234 = vsub.f32 %v1634, %v2233
        %v2235 = vand.u32 %v2234, 4294901760
        %2236 = vmatpush.xpose.msra.mxu0 %v2235
        %v2237 = vand.u32 %v1631, 4294901760
        %v2238 = vsub.f32 %v1631, %v2237
        %v2239 = vand.u32 %v2238, 4294901760
        %2240 = vmatpush.xpose.msra.mxu0 %v2239
        %v2241 = vand.u32 %v1628, 4294901760
        %v2242 = vsub.f32 %v1628, %v2241
        %v2243 = vand.u32 %v2242, 4294901760
        %2244 = vmatpush.xpose.msra.mxu0 %v2243
        %v2245 = vand.u32 %v1625, 4294901760
        %v2246 = vsub.f32 %v1625, %v2245
        %v2247 = vand.u32 %v2246, 4294901760
        %2248 = vmatpush.xpose.msra.mxu0 %v2247
        %v2249 = vand.u32 %v1622, 4294901760
        %v2250 = vsub.f32 %v1622, %v2249
        %v2251 = vand.u32 %v2250, 4294901760
        %2252 = vmatpush.xpose.msra.mxu0 %v2251
        %v2253 = vand.u32 %v1619, 4294901760
        %v2254 = vsub.f32 %v1619, %v2253
        %v2255 = vand.u32 %v2254, 4294901760
        %2256 = vmatpush.xpose.msra.mxu0 %v2255
        %v2257 = vand.u32 %v1616, 4294901760
        %v2258 = vsub.f32 %v1616, %v2257
        %v2259 = vand.u32 %v2258, 4294901760
        %2260 = vmatpush.xpose.msra.mxu0 %v2259
        %v2261 = vand.u32 %v1613, 4294901760
        %v2262 = vsub.f32 %v1613, %v2261
        %v2263 = vand.u32 %v2262, 4294901760
        %2264 = vmatpush.xpose.msra.mxu0 %v2263
        %v2265 = vand.u32 %v1610, 4294901760
        %v2266 = vsub.f32 %v1610, %v2265
        %v2267 = vand.u32 %v2266, 4294901760
        %2268 = vmatpush.xpose.msra.mxu0 %v2267
        %v2269 = vand.u32 %v1607, 4294901760
        %v2270 = vsub.f32 %v1607, %v2269
        %v2271 = vand.u32 %v2270, 4294901760
        %2272 = vmatpush.xpose.msra.mxu0 %v2271
        %v2273 = vand.u32 %v1604, 4294901760
        %v2274 = vsub.f32 %v1604, %v2273
        %v2275 = vand.u32 %v2274, 4294901760
        %2276 = vmatpush.xpose.msra.mxu0 %v2275
        %v2277 = vand.u32 %v1601, 4294901760
        %v2278 = vsub.f32 %v1601, %v2277
        %v2279 = vand.u32 %v2278, 4294901760
        %2280 = vmatpush.xpose.msra.mxu0 %v2279
        %v2281 = vand.u32 %v1598, 4294901760
        %v2282 = vsub.f32 %v1598, %v2281
        %v2283 = vand.u32 %v2282, 4294901760
        %2284 = vmatpush.xpose.msra.mxu0 %v2283
        %v2285 = vand.u32 %v1547, 4294901760
        %2286 = vmatmul.f32.gmra.mxu0 %v2285
        %v2287 = vpop.f32.mrf.mxu0
        %v2288 = vadd.f32 %v2219, %v2287
        %2289 = vdwg.mxu0
        %v2290 = vand.u32 %v1643, 4294901760
        %2291 = vmatpush.xpose.msra.mxu0 %v2290
        %v2292 = vand.u32 %v1640, 4294901760
        %2293 = vmatpush.xpose.msra.mxu0 %v2292
        %v2294 = vand.u32 %v1637, 4294901760
        %2295 = vmatpush.xpose.msra.mxu0 %v2294
        %v2296 = vand.u32 %v1634, 4294901760
        %2297 = vmatpush.xpose.msra.mxu0 %v2296
        %v2298 = vand.u32 %v1631, 4294901760
        %2299 = vmatpush.xpose.msra.mxu0 %v2298
        %v2300 = vand.u32 %v1628, 4294901760
        %2301 = vmatpush.xpose.msra.mxu0 %v2300
        %v2302 = vand.u32 %v1625, 4294901760
        %2303 = vmatpush.xpose.msra.mxu0 %v2302
        %v2304 = vand.u32 %v1622, 4294901760
        %2305 = vmatpush.xpose.msra.mxu0 %v2304
        %v2306 = vand.u32 %v1619, 4294901760
        %2307 = vmatpush.xpose.msra.mxu0 %v2306
        %v2308 = vand.u32 %v1616, 4294901760
        %2309 = vmatpush.xpose.msra.mxu0 %v2308
        %v2310 = vand.u32 %v1613, 4294901760
        %2311 = vmatpush.xpose.msra.mxu0 %v2310
        %v2312 = vand.u32 %v1610, 4294901760
        %2313 = vmatpush.xpose.msra.mxu0 %v2312
        %v2314 = vand.u32 %v1607, 4294901760
        %2315 = vmatpush.xpose.msra.mxu0 %v2314
        %v2316 = vand.u32 %v1604, 4294901760
        %2317 = vmatpush.xpose.msra.mxu0 %v2316
        %v2318 = vand.u32 %v1601, 4294901760
        %2319 = vmatpush.xpose.msra.mxu0 %v2318
        %v2320 = vand.u32 %v1598, 4294901760
        %2321 = vmatpush.xpose.msra.mxu0 %v2320
        %v2322 = vand.u32 %v1547, 4294901760
        %2323 = vmatmul.f32.gmra.mxu0 %v2322
        %v2324 = vpop.f32.mrf.mxu0
        %v2325 = vadd.f32 %v2288, %v2324
        %2326 = vdwg.mxu0
        %v2327 = vmax.f32 %v1984, 0.0
        %v2328 = vmax.f32 %v2325, 0.0
        %v2331 = vrot.slane %v2328, 7
        %vm2332 = vcmask 1040384
        %v2333 = vsel %vm2332, %v2327, %v2331
        %v2335 = vlaneseq
        %vm2336 = vcmp.ge.s32.totalorder %v2335, 0
        %vm2337 = vcmp.lt.s32.totalorder %v2335, 256
        %vm2338 = vmand %vm2336, %vm2337
        %2339 = vst.msk [vmem:[%s219] sm:$0x3] %vm2338, %v2333
        %s2340 = sand.u32 %s138, 1
        %s2341 = scalar_lea.sflag [#allocation4], %s2340
        %s2342 = sand.u32 %s138, 1
        %s2343 = smul.addr %s2342, 2
        %s2344 = scalar_lea.vmem [#allocation3], %s2343
        // Predicated region
        $region41: #{tpu_custom_call.1} parent=39 // pred_check
          %p2345 = pneg %p148
        $region42: #{tpu_custom_call.1} parent=39 // pred_check_branch
          %2347 = sbr.rel (%p2345) target = $region44
        $region43: #{tpu_custom_call.1} parent=39 // pred_region
          %s2348 = smul.u32 2, %s20
          %2350 = vsyncadd %s2341, 0
          %s2351 = scalar_lea.hbm %s5, %s2348
          %s2353 = sshll.u32 %s2344, 4
          %s2354 = int_to_ptr.vmem [resolvable:$true] %s2353
          %s2355 = sshll.u32 %s2351, 4
          %s2356 = int_to_ptr.hbm [resolvable:$true] %s2355
          %2358 = dma.vmem_to_hbm [thread:$0]  %s2354, 32, %s2356, %s2341
        $region44: #{tpu_custom_call.1} parent=39 // pred_fallthru
          _
      $region40: #{tpu_custom_call.1} parent=5 // pred_fallthru
        _
      %p2359 = scmp.le.s32.totalorder 2, %s15
      // Predicated region
      $region45: #{tpu_custom_call.1} parent=5 // pred_check
        %p2360 = pneg %p2359
      $region46: #{tpu_custom_call.1} parent=5 // pred_check_branch
        %2362 = sbr.rel (%p2360) target = $region48
      $region47: #{tpu_custom_call.1} parent=5 // pred_region
        %s2363 = ssub.s32 %s15, 2
        // Predicated region
        $region49: #{tpu_custom_call.1} parent=47 // pred_check
          %p2364 = pneg %p154
        $region50: #{tpu_custom_call.1} parent=47 // pred_check_branch
          %2366 = sbr.rel (%p2364) target = $region52
        $region51: #{tpu_custom_call.1} parent=47 // pred_region
          %s2367 = sand.u32 %s139, 1
          %s2368 = scalar_lea.sflag [#allocation4], %s2367
          %s2369 = sand.u32 %s139, 1
          %s2370 = smul.addr %s2369, 2
          %s2371 = scalar_lea.vmem [#allocation3], %s2370
          %2373 = dma.done %s2368, 32
        $region52: #{tpu_custom_call.1} parent=47 // pred_fallthru
          _
      $region48: #{tpu_custom_call.1} parent=5 // pred_fallthru
        _
    $region6: #{tpu_custom_call.1} parent=1 // loop_footer
      %s19 = sadd.s32 1, %s15
    $region7: #{tpu_custom_call.1} parent=1 // loop_footer_branch
      %14 = sbr.rel target = $region3
    $region8: #{tpu_custom_call.1} parent=1 // loop_exit
      _
    %2374 = vsyncpa [#allocation4], 1
    %s2375 = scalar_lea.sflag [#allocation4], 1
    %2376 = vsyncpa %s2375, 1

</llo_original>
